<compile_context>
chip_gen: v7x
topology: tpu7x:2x2x1
jax: 0.10.0
libtpu: 0.0.40
codegen_flags: <defaults>
</compile_context>

<pallas_src>
import math
import functools

import jax
import jax.numpy as jnp
from jax.experimental import pallas as pl
from jax.experimental.pallas import tpu as pltpu


def _mha_kernel(q_ref, k_ref, v_ref, mask_ref,
                wq_ref, bq_ref, wk_ref, bk_ref, wv_ref, bv_ref,
                wf_ref, bf_ref, o_ref, attn_ref, *, heads, d_subspace):
    bblk, S, D = q_ref.shape
    rows = bblk * S

    # ---- projections: fold (batch_block, seq) into the matmul M dimension ----
    # Operands keep their input dtype (bf16-friendly on v6e/v7x); accumulate in f32.
    q2 = q_ref[...].reshape(rows, D)
    k2 = k_ref[...].reshape(rows, D)
    v2 = v_ref[...].reshape(rows, D)

    Q = jnp.dot(q2, wq_ref[...], preferred_element_type=jnp.float32) + bq_ref[...]
    K = jnp.dot(k2, wk_ref[...], preferred_element_type=jnp.float32) + bk_ref[...]
    V = jnp.dot(v2, wv_ref[...], preferred_element_type=jnp.float32) + bv_ref[...]

    # Fold 1/sqrt(d_subspace) into Q once instead of scaling every (S,S) score tile.
    Q = Q * jnp.float32(1.0 / math.sqrt(d_subspace))

    Q3 = Q.reshape(bblk, S, D)
    K3 = K.reshape(bblk, S, D)
    V3 = V.reshape(bblk, S, D)

    # Additive mask bias computed once for all heads (1 = keep, 0 = masked -> -1e9).
    bias = jnp.where(mask_ref[...] != 0, jnp.float32(0.0), jnp.float32(-1e9))

    # ---- per-head scaled-dot-product attention ----
    # heads is small & static; each head's output lands in a static lane slice of a
    # lane-dense fp32 VMEM scratch (no lane-dim concatenate in the epilogue).
    # TODO(synk): for large S, switch to a KV-tiled online-softmax (flash) structure
    # with an extra 'arbitrary' grid axis so the full (S,S) scores never live in VMEM.
    for h in range(heads):
        lo = h * d_subspace
        hi = lo + d_subspace
        Qh = Q3[:, :, lo:hi]
        Kh = K3[:, :, lo:hi]
        Vh = V3[:, :, lo:hi]

        # Contraction on the per-head feature dim -> no explicit K transpose.
        scores = jnp.einsum("bqd,bkd->bqk", Qh, Kh,
                            preferred_element_type=jnp.float32) + bias

        m = jnp.max(scores, axis=-1, keepdims=True)
        e = jnp.exp(scores - m)
        denom = jnp.sum(e, axis=-1, keepdims=True)
        p = e * pl.reciprocal(denom, approx=True)   # reciprocal on the EUP slot

        attn_ref[:, :, lo:hi] = jnp.einsum("bqk,bkd->bqd", p, Vh,
                                           preferred_element_type=jnp.float32)

    # ---- output projection consumes the contiguous (rows, D) slab ----
    concat = attn_ref[...].reshape(rows, D)
    out = jnp.dot(concat, wf_ref[...], preferred_element_type=jnp.float32) + bf_ref[...]
    o_ref[...] = out.reshape(bblk, S, D).astype(o_ref.dtype)


def _pick_batch_block(B, S, heads, d_model, *, row_target=256,
                      vmem_budget_bytes=8 << 20):
    """Largest divisor of B whose per-step working set stays under a conservative
    VMEM budget; stop growing once the matmul M dim (bblk*S) reaches row_target."""
    best = 1
    for bblk in range(1, B + 1):
        if B % bblk:
            continue
        rows = bblk * S
        # scores/probs/bias for one head (f32) + projected/ctx/in/out activations.
        step_bytes = bblk * S * S * 4 * 3 + 10 * rows * d_model * 4
        if step_bytes > vmem_budget_bytes:
            break
        best = bblk
        if rows >= row_target:
            break
    return best


def multi_head_attention(q, k, v, mask, params, *, heads):
    """q,k,v: [B,S,D]; mask: [B,S,S] (0/1); params: dict of pre-transposed weights."""
    B, S, D = q.shape
    assert D % heads == 0
    d_subspace = D // heads

    bblk = _pick_batch_block(B, S, heads, D)
    grid = (B // bblk,)

    kernel = functools.partial(_mha_kernel, heads=heads, d_subspace=d_subspace)

    seq_spec = pl.BlockSpec((bblk, S, D), lambda b: (b, 0, 0))
    mask_spec = pl.BlockSpec((bblk, S, S), lambda b: (b, 0, 0))
    # Constant index_map -> weights stay resident across grid steps.
    w_spec = pl.BlockSpec((D, D), lambda b: (0, 0))
    b_spec = pl.BlockSpec((1, D), lambda b: (0, 0))

    return pl.pallas_call(
        kernel,
        out_shape=jax.ShapeDtypeStruct((B, S, D), q.dtype),
        grid_spec=pltpu.PrefetchScalarGridSpec(
            num_scalar_prefetch=0,
            grid=grid,
            in_specs=[seq_spec, seq_spec, seq_spec, mask_spec,
                      w_spec, b_spec, w_spec, b_spec, w_spec, b_spec,
                      w_spec, b_spec],
            out_specs=seq_spec,
            scratch_shapes=[pltpu.VMEM((bblk, S, D), jnp.float32)],
        ),
        compiler_params=pltpu.CompilerParams(
            dimension_semantics=("parallel",)),
    )(q, k, v, mask,
      params["wq"], params["bq"], params["wk"], params["bk"],
      params["wv"], params["bv"], params["wf"], params["bf"])


def _reference(q, k, v, mask, params, *, heads):
    """Pure-JAX reference matching the PyTorch forward."""
    B, S, D = q.shape
    ds = D // heads

    def lin(x, w, b):
        return x @ w + b[0]

    Q = lin(q, params["wq"], params["bq"]).reshape(B, S, heads, ds).transpose(0, 2, 1, 3)
    K = lin(k, params["wk"], params["bk"]).reshape(B, S, heads, ds).transpose(0, 2, 1, 3)
    V = lin(v, params["wv"], params["bv"]).reshape(B, S, heads, ds).transpose(0, 2, 1, 3)

    scores = jnp.einsum("bhqd,bhkd->bhqk", Q, K) / math.sqrt(ds)
    scores = jnp.where(mask[:, None, :, :] != 0, scores, -1000000000.0)
    p = jax.nn.softmax(scores, axis=-1)
    out = jnp.einsum("bhqk,bhkd->bhqd", p, V)
    concat = out.transpose(0, 2, 1, 3).reshape(B, S, D)
    return lin(concat, params["wf"], params["bf"])


def _init_linear(key, d_in, d_out):
    # PyTorch nn.Linear default init: U(-1/sqrt(fan_in), 1/sqrt(fan_in)).
    kw, kb = jax.random.split(key)
    bound = 1.0 / math.sqrt(d_in)
    # Stored as [d_in, d_out] (pre-transposed relative to PyTorch's [out, in]).
    w = jax.random.uniform(kw, (d_in, d_out), jnp.float32, -bound, bound)
    b = jax.random.uniform(kb, (1, d_out), jnp.float32, -bound, bound)
    return w, b


if __name__ == "__main__":
    key = jax.random.PRNGKey(0)
    B, S, D, H = 2, 8, 32, 4  # batch, seq, d_model, heads

    keys = jax.random.split(key, 8)
    params = {}
    params["wq"], params["bq"] = _init_linear(keys[0], D, D)
    params["wk"], params["bk"] = _init_linear(keys[1], D, D)
    params["wv"], params["bv"] = _init_linear(keys[2], D, D)
    params["wf"], params["bf"] = _init_linear(keys[3], D, D)

    q = jax.random.normal(keys[4], (B, S, D), jnp.float32)
    k = jax.random.normal(keys[5], (B, S, D), jnp.float32)
    v = jax.random.normal(keys[6], (B, S, D), jnp.float32)
    # Boolean-style mask (1 = attend, 0 = masked); lower-triangular causal mask.
    mask = jnp.tril(jnp.ones((S, S), jnp.float32))[None].repeat(B, axis=0)

    out = multi_head_attention(q, k, v, mask, params, heads=H)
    out = jax.block_until_ready(out)

    ref = _reference(q, k, v, mask, params, heads=H)
    # Slightly loose tolerance: softmax denominator uses the EUP approx reciprocal.
    assert jnp.allclose(out, ref, atol=5e-3, rtol=5e-3), "mismatch vs reference"

    print("KERNEL_OK")
</pallas_src>

<mosaic_0001>
module attributes {stable_mosaic.version = 11 : i64} {
  func.func @_mha_kernel(%arg0: i32, %arg1: memref<2x8x32xf32, #tpu.memory_space<vmem>>, %arg2: memref<2x8x32xf32, #tpu.memory_space<vmem>>, %arg3: memref<2x8x32xf32, #tpu.memory_space<vmem>>, %arg4: memref<2x8x8xf32, #tpu.memory_space<vmem>>, %arg5: memref<32x32xf32, #tpu.memory_space<vmem>>, %arg6: memref<1x32xf32, #tpu.memory_space<vmem>>, %arg7: memref<32x32xf32, #tpu.memory_space<vmem>>, %arg8: memref<1x32xf32, #tpu.memory_space<vmem>>, %arg9: memref<32x32xf32, #tpu.memory_space<vmem>>, %arg10: memref<1x32xf32, #tpu.memory_space<vmem>>, %arg11: memref<32x32xf32, #tpu.memory_space<vmem>>, %arg12: memref<1x32xf32, #tpu.memory_space<vmem>>, %arg13: memref<2x8x32xf32, #tpu.memory_space<vmem>>, %arg14: memref<2x8x32xf32, #tpu.memory_space<vmem>>) attributes {dimension_semantics = [#tpu.dimension_semantics<parallel>], iteration_bounds = array<i64: 1>, scalar_prefetch = 0 : i64, scratch_operands = 1 : i64, tpu.core_type = #tpu.core_type<tc>, window_params = [{transform_indices = @transform_0, window_bounds = array<i64: 2, 8, 32>}, {transform_indices = @transform_1, window_bounds = array<i64: 2, 8, 32>}, {transform_indices = @transform_2, window_bounds = array<i64: 2, 8, 32>}, {transform_indices = @transform_3, window_bounds = array<i64: 2, 8, 8>}, {pipeline_mode = #tpu.pipeline_mode<synchronous>, transform_indices = @transform_4, window_bounds = array<i64: 32, 32>}, {pipeline_mode = #tpu.pipeline_mode<synchronous>, transform_indices = @transform_5, window_bounds = array<i64: 1, 32>}, {pipeline_mode = #tpu.pipeline_mode<synchronous>, transform_indices = @transform_6, window_bounds = array<i64: 32, 32>}, {pipeline_mode = #tpu.pipeline_mode<synchronous>, transform_indices = @transform_7, window_bounds = array<i64: 1, 32>}, {pipeline_mode = #tpu.pipeline_mode<synchronous>, transform_indices = @transform_8, window_bounds = array<i64: 32, 32>}, {pipeline_mode = #tpu.pipeline_mode<synchronous>, transform_indices = @transform_9, window_bounds = array<i64: 1, 32>}, {pipeline_mode = #tpu.pipeline_mode<synchronous>, transform_indices = @transform_10, window_bounds = array<i64: 32, 32>}, {pipeline_mode = #tpu.pipeline_mode<synchronous>, transform_indices = @transform_11, window_bounds = array<i64: 1, 32>}, {transform_indices = @transform_12, window_bounds = array<i64: 2, 8, 32>}]} {
    %c0 = arith.constant 0 : index
    %c0_0 = arith.constant 0 : index
    %c0_1 = arith.constant 0 : index
    %0 = vector.load %arg1[%c0, %c0_0, %c0_1] : memref<2x8x32xf32, #tpu.memory_space<vmem>>, vector<2x8x32xf32>
    %1 = vector.shape_cast %0 : vector<2x8x32xf32> to vector<16x32xf32>
    %c0_2 = arith.constant 0 : index
    %c0_3 = arith.constant 0 : index
    %c0_4 = arith.constant 0 : index
    %2 = vector.load %arg2[%c0_2, %c0_3, %c0_4] : memref<2x8x32xf32, #tpu.memory_space<vmem>>, vector<2x8x32xf32>
    %3 = vector.shape_cast %2 : vector<2x8x32xf32> to vector<16x32xf32>
    %c0_5 = arith.constant 0 : index
    %c0_6 = arith.constant 0 : index
    %c0_7 = arith.constant 0 : index
    %4 = vector.load %arg3[%c0_5, %c0_6, %c0_7] : memref<2x8x32xf32, #tpu.memory_space<vmem>>, vector<2x8x32xf32>
    %5 = vector.shape_cast %4 : vector<2x8x32xf32> to vector<16x32xf32>
    %c0_8 = arith.constant 0 : index
    %c0_9 = arith.constant 0 : index
    %6 = vector.load %arg5[%c0_8, %c0_9] : memref<32x32xf32, #tpu.memory_space<vmem>>, vector<32x32xf32>
    %cst = arith.constant dense<0.000000e+00> : vector<16x32xf32>
    %7 = tpu.matmul %1, %6, %cst {dimension_numbers = #tpu.dot_dimension_numbers<[1], [0], [0], [1], [0, 0, 1, 1], [], []>} : vector<16x32xf32>, vector<32x32xf32>, vector<16x32xf32> -> vector<16x32xf32>
    %c0_10 = arith.constant 0 : index
    %c0_11 = arith.constant 0 : index
    %8 = vector.load %arg6[%c0_10, %c0_11] : memref<1x32xf32, #tpu.memory_space<vmem>>, vector<1x32xf32>
    %9 = vector.broadcast %8 : vector<1x32xf32> to vector<16x32xf32>
    %10 = arith.addf %7, %9 : vector<16x32xf32>
    %c0_12 = arith.constant 0 : index
    %c0_13 = arith.constant 0 : index
    %11 = vector.load %arg7[%c0_12, %c0_13] : memref<32x32xf32, #tpu.memory_space<vmem>>, vector<32x32xf32>
    %cst_14 = arith.constant dense<0.000000e+00> : vector<16x32xf32>
    %12 = tpu.matmul %3, %11, %cst_14 {dimension_numbers = #tpu.dot_dimension_numbers<[1], [0], [0], [1], [0, 0, 1, 1], [], []>} : vector<16x32xf32>, vector<32x32xf32>, vector<16x32xf32> -> vector<16x32xf32>
    %c0_15 = arith.constant 0 : index
    %c0_16 = arith.constant 0 : index
    %13 = vector.load %arg8[%c0_15, %c0_16] : memref<1x32xf32, #tpu.memory_space<vmem>>, vector<1x32xf32>
    %14 = vector.broadcast %13 : vector<1x32xf32> to vector<16x32xf32>
    %15 = arith.addf %12, %14 : vector<16x32xf32>
    %c0_17 = arith.constant 0 : index
    %c0_18 = arith.constant 0 : index
    %16 = vector.load %arg9[%c0_17, %c0_18] : memref<32x32xf32, #tpu.memory_space<vmem>>, vector<32x32xf32>
    %cst_19 = arith.constant dense<0.000000e+00> : vector<16x32xf32>
    %17 = tpu.matmul %5, %16, %cst_19 {dimension_numbers = #tpu.dot_dimension_numbers<[1], [0], [0], [1], [0, 0, 1, 1], [], []>} : vector<16x32xf32>, vector<32x32xf32>, vector<16x32xf32> -> vector<16x32xf32>
    %c0_20 = arith.constant 0 : index
    %c0_21 = arith.constant 0 : index
    %18 = vector.load %arg10[%c0_20, %c0_21] : memref<1x32xf32, #tpu.memory_space<vmem>>, vector<1x32xf32>
    %19 = vector.broadcast %18 : vector<1x32xf32> to vector<16x32xf32>
    %20 = arith.addf %17, %19 : vector<16x32xf32>
    %cst_22 = arith.constant 0.353553385 : f32
    %21 = vector.broadcast %cst_22 : f32 to vector<16x32xf32>
    %22 = arith.mulf %10, %21 : vector<16x32xf32>
    %23 = vector.shape_cast %22 : vector<16x32xf32> to vector<2x8x32xf32>
    %24 = vector.shape_cast %15 : vector<16x32xf32> to vector<2x8x32xf32>
    %25 = vector.shape_cast %20 : vector<16x32xf32> to vector<2x8x32xf32>
    %c0_23 = arith.constant 0 : index
    %c0_24 = arith.constant 0 : index
    %c0_25 = arith.constant 0 : index
    %26 = vector.load %arg4[%c0_23, %c0_24, %c0_25] : memref<2x8x8xf32, #tpu.memory_space<vmem>>, vector<2x8x8xf32>
    %cst_26 = arith.constant 0.000000e+00 : f32
    %27 = vector.broadcast %cst_26 : f32 to vector<2x8x8xf32>
    %28 = arith.cmpf one, %26, %27 : vector<2x8x8xf32>
    %cst_27 = arith.constant 0.000000e+00 : f32
    %cst_28 = arith.constant -1.000000e+09 : f32
    %29 = vector.broadcast %cst_27 : f32 to vector<2x8x8xf32>
    %30 = vector.broadcast %cst_28 : f32 to vector<2x8x8xf32>
    %31 = arith.select %28, %29, %30 : vector<2x8x8xi1>, vector<2x8x8xf32>
    %32 = vector.extract_strided_slice %23 {offsets = [0, 0, 0], sizes = [2, 8, 8], strides = [1, 1, 1]} : vector<2x8x32xf32> to vector<2x8x8xf32>
    %33 = vector.extract_strided_slice %24 {offsets = [0, 0, 0], sizes = [2, 8, 8], strides = [1, 1, 1]} : vector<2x8x32xf32> to vector<2x8x8xf32>
    %34 = vector.extract_strided_slice %25 {offsets = [0, 0, 0], sizes = [2, 8, 8], strides = [1, 1, 1]} : vector<2x8x32xf32> to vector<2x8x8xf32>
    "tpu.trace_start"() <{level = 10 : i32, message = "bqd,bkd->bqk"}> : () -> ()
    %cst_29 = arith.constant dense<0.000000e+00> : vector<2x8x8xf32>
    %35 = tpu.matmul %32, %33, %cst_29 {dimension_numbers = #tpu.dot_dimension_numbers<[2], [2], [1], [1], [0, 0, 0, 1, 1, 1], [0], [0]>} : vector<2x8x8xf32>, vector<2x8x8xf32>, vector<2x8x8xf32> -> vector<2x8x8xf32>
    "tpu.trace_stop"() : () -> ()
    %36 = arith.addf %35, %31 : vector<2x8x8xf32>
    %cst_30 = arith.constant dense<0xFF800000> : vector<2x8xf32>
    %37 = vector.multi_reduction <maximumf>, %36, %cst_30 [2] : vector<2x8x8xf32> to vector<2x8xf32>
    %38 = vector.shape_cast %37 : vector<2x8xf32> to vector<2x8x1xf32>
    %39 = vector.broadcast %38 : vector<2x8x1xf32> to vector<2x8x8xf32>
    %40 = arith.subf %36, %39 : vector<2x8x8xf32>
    %41 = math.exp %40 : vector<2x8x8xf32>
    %cst_31 = arith.constant dense<0.000000e+00> : vector<2x8xf32>
    %42 = vector.multi_reduction <add>, %41, %cst_31 [2] : vector<2x8x8xf32> to vector<2x8xf32>
    %43 = vector.shape_cast %42 : vector<2x8xf32> to vector<2x8x1xf32>
    %44 = tpu.reciprocal %43 {approx = true} : vector<2x8x1xf32> -> vector<2x8x1xf32>
    %45 = vector.broadcast %44 : vector<2x8x1xf32> to vector<2x8x8xf32>
    %46 = arith.mulf %41, %45 : vector<2x8x8xf32>
    "tpu.trace_start"() <{level = 10 : i32, message = "bqk,bkd->bqd"}> : () -> ()
    %cst_32 = arith.constant dense<0.000000e+00> : vector<2x8x8xf32>
    %47 = tpu.matmul %46, %34, %cst_32 {dimension_numbers = #tpu.dot_dimension_numbers<[2], [1], [1], [2], [0, 0, 0, 1, 1, 2], [0], [0]>} : vector<2x8x8xf32>, vector<2x8x8xf32>, vector<2x8x8xf32> -> vector<2x8x8xf32>
    "tpu.trace_stop"() : () -> ()
    %c0_33 = arith.constant 0 : index
    %c0_34 = arith.constant 0 : index
    %c0_35 = arith.constant 0 : index
    %48 = vector.load %arg14[%c0_33, %c0_34, %c0_35] : memref<2x8x32xf32, #tpu.memory_space<vmem>>, vector<2x8x8xf32>
    tpu.vector_store %arg14[%c0_33, %c0_34, %c0_35], %47 {strides = array<i32>} : memref<2x8x32xf32, #tpu.memory_space<vmem>>, vector<2x8x8xf32>,
    %49 = vector.extract_strided_slice %23 {offsets = [0, 0, 8], sizes = [2, 8, 8], strides = [1, 1, 1]} : vector<2x8x32xf32> to vector<2x8x8xf32>
    %50 = vector.extract_strided_slice %24 {offsets = [0, 0, 8], sizes = [2, 8, 8], strides = [1, 1, 1]} : vector<2x8x32xf32> to vector<2x8x8xf32>
    %51 = vector.extract_strided_slice %25 {offsets = [0, 0, 8], sizes = [2, 8, 8], strides = [1, 1, 1]} : vector<2x8x32xf32> to vector<2x8x8xf32>
    "tpu.trace_start"() <{level = 10 : i32, message = "bqd,bkd->bqk"}> : () -> ()
    %cst_36 = arith.constant dense<0.000000e+00> : vector<2x8x8xf32>
    %52 = tpu.matmul %49, %50, %cst_36 {dimension_numbers = #tpu.dot_dimension_numbers<[2], [2], [1], [1], [0, 0, 0, 1, 1, 1], [0], [0]>} : vector<2x8x8xf32>, vector<2x8x8xf32>, vector<2x8x8xf32> -> vector<2x8x8xf32>
    "tpu.trace_stop"() : () -> ()
    %53 = arith.addf %52, %31 : vector<2x8x8xf32>
    %cst_37 = arith.constant dense<0xFF800000> : vector<2x8xf32>
    %54 = vector.multi_reduction <maximumf>, %53, %cst_37 [2] : vector<2x8x8xf32> to vector<2x8xf32>
    %55 = vector.shape_cast %54 : vector<2x8xf32> to vector<2x8x1xf32>
    %56 = vector.broadcast %55 : vector<2x8x1xf32> to vector<2x8x8xf32>
    %57 = arith.subf %53, %56 : vector<2x8x8xf32>
    %58 = math.exp %57 : vector<2x8x8xf32>
    %cst_38 = arith.constant dense<0.000000e+00> : vector<2x8xf32>
    %59 = vector.multi_reduction <add>, %58, %cst_38 [2] : vector<2x8x8xf32> to vector<2x8xf32>
    %60 = vector.shape_cast %59 : vector<2x8xf32> to vector<2x8x1xf32>
    %61 = tpu.reciprocal %60 {approx = true} : vector<2x8x1xf32> -> vector<2x8x1xf32>
    %62 = vector.broadcast %61 : vector<2x8x1xf32> to vector<2x8x8xf32>
    %63 = arith.mulf %58, %62 : vector<2x8x8xf32>
    "tpu.trace_start"() <{level = 10 : i32, message = "bqk,bkd->bqd"}> : () -> ()
    %cst_39 = arith.constant dense<0.000000e+00> : vector<2x8x8xf32>
    %64 = tpu.matmul %63, %51, %cst_39 {dimension_numbers = #tpu.dot_dimension_numbers<[2], [1], [1], [2], [0, 0, 0, 1, 1, 2], [0], [0]>} : vector<2x8x8xf32>, vector<2x8x8xf32>, vector<2x8x8xf32> -> vector<2x8x8xf32>
    "tpu.trace_stop"() : () -> ()
    %c0_40 = arith.constant 0 : index
    %c0_41 = arith.constant 0 : index
    %c8 = arith.constant 8 : index
    %65 = vector.load %arg14[%c0_40, %c0_41, %c8] : memref<2x8x32xf32, #tpu.memory_space<vmem>>, vector<2x8x8xf32>
    tpu.vector_store %arg14[%c0_40, %c0_41, %c8], %64 {strides = array<i32>} : memref<2x8x32xf32, #tpu.memory_space<vmem>>, vector<2x8x8xf32>,
    %66 = vector.extract_strided_slice %23 {offsets = [0, 0, 16], sizes = [2, 8, 8], strides = [1, 1, 1]} : vector<2x8x32xf32> to vector<2x8x8xf32>
    %67 = vector.extract_strided_slice %24 {offsets = [0, 0, 16], sizes = [2, 8, 8], strides = [1, 1, 1]} : vector<2x8x32xf32> to vector<2x8x8xf32>
    %68 = vector.extract_strided_slice %25 {offsets = [0, 0, 16], sizes = [2, 8, 8], strides = [1, 1, 1]} : vector<2x8x32xf32> to vector<2x8x8xf32>
    "tpu.trace_start"() <{level = 10 : i32, message = "bqd,bkd->bqk"}> : () -> ()
    %cst_42 = arith.constant dense<0.000000e+00> : vector<2x8x8xf32>
    %69 = tpu.matmul %66, %67, %cst_42 {dimension_numbers = #tpu.dot_dimension_numbers<[2], [2], [1], [1], [0, 0, 0, 1, 1, 1], [0], [0]>} : vector<2x8x8xf32>, vector<2x8x8xf32>, vector<2x8x8xf32> -> vector<2x8x8xf32>
    "tpu.trace_stop"() : () -> ()
    %70 = arith.addf %69, %31 : vector<2x8x8xf32>
    %cst_43 = arith.constant dense<0xFF800000> : vector<2x8xf32>
    %71 = vector.multi_reduction <maximumf>, %70, %cst_43 [2] : vector<2x8x8xf32> to vector<2x8xf32>
    %72 = vector.shape_cast %71 : vector<2x8xf32> to vector<2x8x1xf32>
    %73 = vector.broadcast %72 : vector<2x8x1xf32> to vector<2x8x8xf32>
    %74 = arith.subf %70, %73 : vector<2x8x8xf32>
    %75 = math.exp %74 : vector<2x8x8xf32>
    %cst_44 = arith.constant dense<0.000000e+00> : vector<2x8xf32>
    %76 = vector.multi_reduction <add>, %75, %cst_44 [2] : vector<2x8x8xf32> to vector<2x8xf32>
    %77 = vector.shape_cast %76 : vector<2x8xf32> to vector<2x8x1xf32>
    %78 = tpu.reciprocal %77 {approx = true} : vector<2x8x1xf32> -> vector<2x8x1xf32>
    %79 = vector.broadcast %78 : vector<2x8x1xf32> to vector<2x8x8xf32>
    %80 = arith.mulf %75, %79 : vector<2x8x8xf32>
    "tpu.trace_start"() <{level = 10 : i32, message = "bqk,bkd->bqd"}> : () -> ()
    %cst_45 = arith.constant dense<0.000000e+00> : vector<2x8x8xf32>
    %81 = tpu.matmul %80, %68, %cst_45 {dimension_numbers = #tpu.dot_dimension_numbers<[2], [1], [1], [2], [0, 0, 0, 1, 1, 2], [0], [0]>} : vector<2x8x8xf32>, vector<2x8x8xf32>, vector<2x8x8xf32> -> vector<2x8x8xf32>
    "tpu.trace_stop"() : () -> ()
    %c0_46 = arith.constant 0 : index
    %c0_47 = arith.constant 0 : index
    %c16 = arith.constant 16 : index
    %82 = vector.load %arg14[%c0_46, %c0_47, %c16] : memref<2x8x32xf32, #tpu.memory_space<vmem>>, vector<2x8x8xf32>
    tpu.vector_store %arg14[%c0_46, %c0_47, %c16], %81 {strides = array<i32>} : memref<2x8x32xf32, #tpu.memory_space<vmem>>, vector<2x8x8xf32>,
    %83 = vector.extract_strided_slice %23 {offsets = [0, 0, 24], sizes = [2, 8, 8], strides = [1, 1, 1]} : vector<2x8x32xf32> to vector<2x8x8xf32>
    %84 = vector.extract_strided_slice %24 {offsets = [0, 0, 24], sizes = [2, 8, 8], strides = [1, 1, 1]} : vector<2x8x32xf32> to vector<2x8x8xf32>
    %85 = vector.extract_strided_slice %25 {offsets = [0, 0, 24], sizes = [2, 8, 8], strides = [1, 1, 1]} : vector<2x8x32xf32> to vector<2x8x8xf32>
    "tpu.trace_start"() <{level = 10 : i32, message = "bqd,bkd->bqk"}> : () -> ()
    %cst_48 = arith.constant dense<0.000000e+00> : vector<2x8x8xf32>
    %86 = tpu.matmul %83, %84, %cst_48 {dimension_numbers = #tpu.dot_dimension_numbers<[2], [2], [1], [1], [0, 0, 0, 1, 1, 1], [0], [0]>} : vector<2x8x8xf32>, vector<2x8x8xf32>, vector<2x8x8xf32> -> vector<2x8x8xf32>
    "tpu.trace_stop"() : () -> ()
    %87 = arith.addf %86, %31 : vector<2x8x8xf32>
    %cst_49 = arith.constant dense<0xFF800000> : vector<2x8xf32>
    %88 = vector.multi_reduction <maximumf>, %87, %cst_49 [2] : vector<2x8x8xf32> to vector<2x8xf32>
    %89 = vector.shape_cast %88 : vector<2x8xf32> to vector<2x8x1xf32>
    %90 = vector.broadcast %89 : vector<2x8x1xf32> to vector<2x8x8xf32>
    %91 = arith.subf %87, %90 : vector<2x8x8xf32>
    %92 = math.exp %91 : vector<2x8x8xf32>
    %cst_50 = arith.constant dense<0.000000e+00> : vector<2x8xf32>
    %93 = vector.multi_reduction <add>, %92, %cst_50 [2] : vector<2x8x8xf32> to vector<2x8xf32>
    %94 = vector.shape_cast %93 : vector<2x8xf32> to vector<2x8x1xf32>
    %95 = tpu.reciprocal %94 {approx = true} : vector<2x8x1xf32> -> vector<2x8x1xf32>
    %96 = vector.broadcast %95 : vector<2x8x1xf32> to vector<2x8x8xf32>
    %97 = arith.mulf %92, %96 : vector<2x8x8xf32>
    "tpu.trace_start"() <{level = 10 : i32, message = "bqk,bkd->bqd"}> : () -> ()
    %cst_51 = arith.constant dense<0.000000e+00> : vector<2x8x8xf32>
    %98 = tpu.matmul %97, %85, %cst_51 {dimension_numbers = #tpu.dot_dimension_numbers<[2], [1], [1], [2], [0, 0, 0, 1, 1, 2], [0], [0]>} : vector<2x8x8xf32>, vector<2x8x8xf32>, vector<2x8x8xf32> -> vector<2x8x8xf32>
    "tpu.trace_stop"() : () -> ()
    %c0_52 = arith.constant 0 : index
    %c0_53 = arith.constant 0 : index
    %c24 = arith.constant 24 : index
    %99 = vector.load %arg14[%c0_52, %c0_53, %c24] : memref<2x8x32xf32, #tpu.memory_space<vmem>>, vector<2x8x8xf32>
    tpu.vector_store %arg14[%c0_52, %c0_53, %c24], %98 {strides = array<i32>} : memref<2x8x32xf32, #tpu.memory_space<vmem>>, vector<2x8x8xf32>,
    %c0_54 = arith.constant 0 : index
    %c0_55 = arith.constant 0 : index
    %c0_56 = arith.constant 0 : index
    %100 = vector.load %arg14[%c0_54, %c0_55, %c0_56] : memref<2x8x32xf32, #tpu.memory_space<vmem>>, vector<2x8x32xf32>
    %101 = vector.shape_cast %100 : vector<2x8x32xf32> to vector<16x32xf32>
    %c0_57 = arith.constant 0 : index
    %c0_58 = arith.constant 0 : index
    %102 = vector.load %arg11[%c0_57, %c0_58] : memref<32x32xf32, #tpu.memory_space<vmem>>, vector<32x32xf32>
    %cst_59 = arith.constant dense<0.000000e+00> : vector<16x32xf32>
    %103 = tpu.matmul %101, %102, %cst_59 {dimension_numbers = #tpu.dot_dimension_numbers<[1], [0], [0], [1], [0, 0, 1, 1], [], []>} : vector<16x32xf32>, vector<32x32xf32>, vector<16x32xf32> -> vector<16x32xf32>
    %c0_60 = arith.constant 0 : index
    %c0_61 = arith.constant 0 : index
    %104 = vector.load %arg12[%c0_60, %c0_61] : memref<1x32xf32, #tpu.memory_space<vmem>>, vector<1x32xf32>
    %105 = vector.broadcast %104 : vector<1x32xf32> to vector<16x32xf32>
    %106 = arith.addf %103, %105 : vector<16x32xf32>
    %107 = vector.shape_cast %106 : vector<16x32xf32> to vector<2x8x32xf32>
    %c0_62 = arith.constant 0 : index
    %c0_63 = arith.constant 0 : index
    %c0_64 = arith.constant 0 : index
    %108 = vector.load %arg13[%c0_62, %c0_63, %c0_64] : memref<2x8x32xf32, #tpu.memory_space<vmem>>, vector<2x8x32xf32>
    tpu.vector_store %arg13[%c0_62, %c0_63, %c0_64], %107 {strides = array<i32>} : memref<2x8x32xf32, #tpu.memory_space<vmem>>, vector<2x8x32xf32>,
    return
  }
  func.func @transform_0(%arg0: i32) -> (i32, i32, i32) {
    %c0_i32 = arith.constant 0 : i32
    %c0_i32_0 = arith.constant 0 : i32
    %c0_i32_1 = arith.constant 0 : i32
    return %arg0, %c0_i32, %c0_i32_0 : i32, i32, i32
  }
  func.func @transform_1(%arg0: i32) -> (i32, i32, i32) {
    %c0_i32 = arith.constant 0 : i32
    %c0_i32_0 = arith.constant 0 : i32
    %c0_i32_1 = arith.constant 0 : i32
    return %arg0, %c0_i32, %c0_i32_0 : i32, i32, i32
  }
  func.func @transform_2(%arg0: i32) -> (i32, i32, i32) {
    %c0_i32 = arith.constant 0 : i32
    %c0_i32_0 = arith.constant 0 : i32
    %c0_i32_1 = arith.constant 0 : i32
    return %arg0, %c0_i32, %c0_i32_0 : i32, i32, i32
  }
  func.func @transform_3(%arg0: i32) -> (i32, i32, i32) {
    %c0_i32 = arith.constant 0 : i32
    %c0_i32_0 = arith.constant 0 : i32
    %c0_i32_1 = arith.constant 0 : i32
    return %arg0, %c0_i32, %c0_i32_0 : i32, i32, i32
  }
  func.func @transform_4(%arg0: i32) -> (i32, i32) {
    %c0_i32 = arith.constant 0 : i32
    %c0_i32_0 = arith.constant 0 : i32
    %c0_i32_1 = arith.constant 0 : i32
    return %c0_i32, %c0_i32_0 : i32, i32
  }
  func.func @transform_5(%arg0: i32) -> (i32, i32) {
    %c0_i32 = arith.constant 0 : i32
    %c0_i32_0 = arith.constant 0 : i32
    %c0_i32_1 = arith.constant 0 : i32
    return %c0_i32, %c0_i32_0 : i32, i32
  }
  func.func @transform_6(%arg0: i32) -> (i32, i32) {
    %c0_i32 = arith.constant 0 : i32
    %c0_i32_0 = arith.constant 0 : i32
    %c0_i32_1 = arith.constant 0 : i32
    return %c0_i32, %c0_i32_0 : i32, i32
  }
  func.func @transform_7(%arg0: i32) -> (i32, i32) {
    %c0_i32 = arith.constant 0 : i32
    %c0_i32_0 = arith.constant 0 : i32
    %c0_i32_1 = arith.constant 0 : i32
    return %c0_i32, %c0_i32_0 : i32, i32
  }
  func.func @transform_8(%arg0: i32) -> (i32, i32) {
    %c0_i32 = arith.constant 0 : i32
    %c0_i32_0 = arith.constant 0 : i32
    %c0_i32_1 = arith.constant 0 : i32
    return %c0_i32, %c0_i32_0 : i32, i32
  }
  func.func @transform_9(%arg0: i32) -> (i32, i32) {
    %c0_i32 = arith.constant 0 : i32
    %c0_i32_0 = arith.constant 0 : i32
    %c0_i32_1 = arith.constant 0 : i32
    return %c0_i32, %c0_i32_0 : i32, i32
  }
  func.func @transform_10(%arg0: i32) -> (i32, i32) {
    %c0_i32 = arith.constant 0 : i32
    %c0_i32_0 = arith.constant 0 : i32
    %c0_i32_1 = arith.constant 0 : i32
    return %c0_i32, %c0_i32_0 : i32, i32
  }
  func.func @transform_11(%arg0: i32) -> (i32, i32) {
    %c0_i32 = arith.constant 0 : i32
    %c0_i32_0 = arith.constant 0 : i32
    %c0_i32_1 = arith.constant 0 : i32
    return %c0_i32, %c0_i32_0 : i32, i32
  }
  func.func @transform_12(%arg0: i32) -> (i32, i32, i32) {
    %c0_i32 = arith.constant 0 : i32
    %c0_i32_0 = arith.constant 0 : i32
    %c0_i32_1 = arith.constant 0 : i32
    return %arg0, %c0_i32, %c0_i32_0 : i32, i32, i32
  }
}

</mosaic_0001>

<llo_original>
// kernel: tpu_custom_call.1
$region0: #{tpu_custom_call.1}
  #allocation0 [shape = 'u32[]', space=smem, size = 0x4, offset = 0x4, fixed_abs, tag = 'smem constant byte address 0x4 - core index']
  #allocation1 [shape = 'u32[144,128]{1,0:T(1,128)}', space=vmem, size = 0x12000, scoped, tag = 'internal scratch']
  #allocation2 [shape = 'f32[2,8,32]{2,1,0:T(8,128)}', space=vmem, size = 0x2000, scoped, tag = 'scratch operand']
  %s0 = inlined_call_operand.hbm [shape: f32[2,8,32], index: 0, kind: input, shape index: {}]
  %s1 = inlined_call_operand.hbm [shape: f32[2,8,32], index: 1, kind: input, shape index: {}]
  %s2 = inlined_call_operand.hbm [shape: f32[2,8,32], index: 2, kind: input, shape index: {}]
  %s3 = inlined_call_operand.hbm [shape: f32[2,8,8], index: 3, kind: input, shape index: {}]
  %s4 = inlined_call_operand.hbm [shape: f32[32,32], index: 4, kind: input, shape index: {}]
  %s5 = inlined_call_operand.vmem [shape: f32[1,32], index: 5, kind: input, shape index: {}]
  %s6 = inlined_call_operand.hbm [shape: f32[32,32], index: 6, kind: input, shape index: {}]
  %s7 = inlined_call_operand.vmem [shape: f32[1,32], index: 7, kind: input, shape index: {}]
  %s8 = inlined_call_operand.hbm [shape: f32[32,32], index: 8, kind: input, shape index: {}]
  %s9 = inlined_call_operand.vmem [shape: f32[1,32], index: 9, kind: input, shape index: {}]
  %s10 = inlined_call_operand.vmem [shape: f32[32,32], index: 10, kind: input, shape index: {}]
  %s11 = inlined_call_operand.vmem [shape: f32[1,32], index: 11, kind: input, shape index: {}]
  %s12 = inlined_call_operand.hbm [shape: f32[2,8,32], index: 12, kind: output, shape index: {}]
  %s13 = sld [smem:[#allocation0]]
  $region86: #{tpu_custom_call.1} parent=0
    _
  %s15 = ssub.s32 1, %s13
  %s16 = scalar_select 0, %s15, %s13
  $region1: #{tpu_custom_call.1} parent=0
    #allocation3 [shape = 'u8[8192]{0}', space=vmem, size = 0x2000, scoped, tag = 'input window, operand 0, single buffered']
    #allocation4 [shape = 's32[1]{0}', space=sflag, size = 0x4, scoped, tag = 'scoped memory for tpu_custom_call.1']
    #allocation5 [shape = 's32[1]{0}', space=sflag, size = 0x4, scoped, tag = 'scoped memory for tpu_custom_call.1']
    #allocation6 [shape = 'u8[8192]{0}', space=vmem, size = 0x2000, scoped, tag = 'input window, operand 1, single buffered']
    #allocation7 [shape = 's32[1]{0}', space=sflag, size = 0x4, scoped, tag = 'scoped memory for tpu_custom_call.1']
    #allocation8 [shape = 'u8[8192]{0}', space=vmem, size = 0x2000, scoped, tag = 'input window, operand 2, single buffered']
    #allocation9 [shape = 'u8[8192]{0}', space=vmem, size = 0x2000, scoped, tag = 'input window, operand 3, single buffered']
    #allocation10 [shape = 's32[1]{0}', space=sflag, size = 0x4, scoped, tag = 'scoped memory for tpu_custom_call.1']
    #allocation11 [shape = 'u8[16384]{0}', space=vmem, size = 0x4000, scoped, tag = 'input window, operand 4, single buffered']
    #allocation12 [shape = 'u8[16384]{0}', space=vmem, size = 0x4000, scoped, tag = 'input window, operand 6, single buffered']
    #allocation13 [shape = 's32[1]{0}', space=sflag, size = 0x4, scoped, tag = 'scoped memory for tpu_custom_call.1']
    #allocation14 [shape = 'u8[16384]{0}', space=vmem, size = 0x4000, scoped, tag = 'input window, operand 8, single buffered']
    #allocation15 [shape = 'u8[8192]{0}', space=vmem, size = 0x2000, scoped, tag = 'output window, operand 0, single buffered']
    %17 = vsyncpa [#allocation4], 0
    %18 = vsyncpa [#allocation7], 0
    %19 = vsyncpa [#allocation10], 0
    %20 = vsyncpa [#allocation13], 0
    %21 = vsyncpa [#allocation5], 0
    // Predicated region
    $region2: #{tpu_custom_call.1} parent=1 // pred_check
      _
    $region3: #{tpu_custom_call.1} parent=1 // pred_check_branch
      %23 = sbr.rel (0) target = $region5
    $region4: #{tpu_custom_call.1} parent=1 // pred_region
      %s25 = ssub.s32 256, 256
      %26 = vsyncadd [#allocation4], %s25
      %s27 = sshll.u32 [#allocation3], 4
      %s28 = int_to_ptr.vmem [resolvable:$true] %s27
      %33 = dma.hbm_to_vmem [thread:$0]  %s0, 256, %s28, [#allocation4], 128, 128, 8
    $region5: #{tpu_custom_call.1} parent=1 // pred_fallthru
      _
    // Predicated region
    $region6: #{tpu_custom_call.1} parent=1 // pred_check
      _
    $region7: #{tpu_custom_call.1} parent=1 // pred_check_branch
      %35 = sbr.rel (0) target = $region9
    $region8: #{tpu_custom_call.1} parent=1 // pred_region
      %s37 = ssub.s32 256, 256
      %38 = vsyncadd [#allocation7], %s37
      %s39 = sshll.u32 [#allocation6], 4
      %s40 = int_to_ptr.vmem [resolvable:$true] %s39
      %45 = dma.hbm_to_vmem [thread:$0]  %s1, 256, %s40, [#allocation7], 128, 128, 8
    $region9: #{tpu_custom_call.1} parent=1 // pred_fallthru
      _
    // Predicated region
    $region10: #{tpu_custom_call.1} parent=1 // pred_check
      _
    $region11: #{tpu_custom_call.1} parent=1 // pred_check_branch
      %47 = sbr.rel (0) target = $region13
    $region12: #{tpu_custom_call.1} parent=1 // pred_region
      %s49 = ssub.s32 256, 256
      %50 = vsyncadd [#allocation7], %s49
      %s51 = sshll.u32 [#allocation8], 4
      %s52 = int_to_ptr.vmem [resolvable:$true] %s51
      %57 = dma.hbm_to_vmem [thread:$0]  %s2, 256, %s52, [#allocation7], 128, 128, 8
    $region13: #{tpu_custom_call.1} parent=1 // pred_fallthru
      _
    // Predicated region
    $region14: #{tpu_custom_call.1} parent=1 // pred_check
      _
    $region15: #{tpu_custom_call.1} parent=1 // pred_check_branch
      %59 = sbr.rel (0) target = $region17
    $region16: #{tpu_custom_call.1} parent=1 // pred_region
      %s61 = ssub.s32 256, 256
      %62 = vsyncadd [#allocation10], %s61
      %s63 = sshll.u32 [#allocation9], 4
      %s64 = int_to_ptr.vmem [resolvable:$true] %s63
      %69 = dma.hbm_to_vmem [thread:$0]  %s3, 256, %s64, [#allocation10], 128, 128, 8
    $region17: #{tpu_custom_call.1} parent=1 // pred_fallthru
      _
    // Predicated region
    $region18: #{tpu_custom_call.1} parent=1 // pred_check
      _
    $region19: #{tpu_custom_call.1} parent=1 // pred_check_branch
      %71 = sbr.rel (0) target = $region21
    $region20: #{tpu_custom_call.1} parent=1 // pred_region
      %s73 = ssub.s32 512, 512
      %74 = vsyncadd [#allocation10], %s73
      %s75 = sshll.u32 [#allocation11], 4
      %s76 = int_to_ptr.vmem [resolvable:$true] %s75
      %81 = dma.hbm_to_vmem [thread:$0]  %s4, 512, %s76, [#allocation10], 128, 128, 8
    $region21: #{tpu_custom_call.1} parent=1 // pred_fallthru
      _
    // Predicated region
    $region22: #{tpu_custom_call.1} parent=1 // pred_check
      _
    $region23: #{tpu_custom_call.1} parent=1 // pred_check_branch
      %83 = sbr.rel (0) target = $region25
    $region24: #{tpu_custom_call.1} parent=1 // pred_region
      _
    $region25: #{tpu_custom_call.1} parent=1 // pred_fallthru
      _
    // Predicated region
    $region26: #{tpu_custom_call.1} parent=1 // pred_check
      _
    $region27: #{tpu_custom_call.1} parent=1 // pred_check_branch
      %85 = sbr.rel (0) target = $region29
    $region28: #{tpu_custom_call.1} parent=1 // pred_region
      %s87 = ssub.s32 512, 512
      %88 = vsyncadd [#allocation13], %s87
      %s89 = sshll.u32 [#allocation12], 4
      %s90 = int_to_ptr.vmem [resolvable:$true] %s89
      %95 = dma.hbm_to_vmem [thread:$0]  %s6, 512, %s90, [#allocation13], 128, 128, 8
    $region29: #{tpu_custom_call.1} parent=1 // pred_fallthru
      _
    // Predicated region
    $region30: #{tpu_custom_call.1} parent=1 // pred_check
      _
    $region31: #{tpu_custom_call.1} parent=1 // pred_check_branch
      %97 = sbr.rel (0) target = $region33
    $region32: #{tpu_custom_call.1} parent=1 // pred_region
      _
    $region33: #{tpu_custom_call.1} parent=1 // pred_fallthru
      _
    // Predicated region
    $region34: #{tpu_custom_call.1} parent=1 // pred_check
      _
    $region35: #{tpu_custom_call.1} parent=1 // pred_check_branch
      %99 = sbr.rel (0) target = $region37
    $region36: #{tpu_custom_call.1} parent=1 // pred_region
      %s101 = ssub.s32 512, 512
      %102 = vsyncadd [#allocation13], %s101
      %s103 = sshll.u32 [#allocation14], 4
      %s104 = int_to_ptr.vmem [resolvable:$true] %s103
      %109 = dma.hbm_to_vmem [thread:$0]  %s8, 512, %s104, [#allocation13], 128, 128, 8
    $region37: #{tpu_custom_call.1} parent=1 // pred_fallthru
      _
    // Predicated region
    $region38: #{tpu_custom_call.1} parent=1 // pred_check
      _
    $region39: #{tpu_custom_call.1} parent=1 // pred_check_branch
      %111 = sbr.rel (0) target = $region41
    $region40: #{tpu_custom_call.1} parent=1 // pred_region
      _
    $region41: #{tpu_custom_call.1} parent=1 // pred_fallthru
      _
    // Predicated region
    $region42: #{tpu_custom_call.1} parent=1 // pred_check
      _
    $region43: #{tpu_custom_call.1} parent=1 // pred_check_branch
      %113 = sbr.rel (0) target = $region45
    $region44: #{tpu_custom_call.1} parent=1 // pred_region
      _
    $region45: #{tpu_custom_call.1} parent=1 // pred_fallthru
      _
    // Predicated region
    $region46: #{tpu_custom_call.1} parent=1 // pred_check
      _
    $region47: #{tpu_custom_call.1} parent=1 // pred_check_branch
      %115 = sbr.rel (0) target = $region49
    $region48: #{tpu_custom_call.1} parent=1 // pred_region
      _
    $region49: #{tpu_custom_call.1} parent=1 // pred_fallthru
      _
    // Predicated region
    $region50: #{tpu_custom_call.1} parent=1 // pred_check
      _
    $region51: #{tpu_custom_call.1} parent=1 // pred_check_branch
      %117 = sbr.rel (0) target = $region53
    $region52: #{tpu_custom_call.1} parent=1 // pred_region
      %118 = dma.done [#allocation4], 256
    $region53: #{tpu_custom_call.1} parent=1 // pred_fallthru
      _
    // Predicated region
    $region54: #{tpu_custom_call.1} parent=1 // pred_check
      _
    $region55: #{tpu_custom_call.1} parent=1 // pred_check_branch
      %120 = sbr.rel (0) target = $region57
    $region56: #{tpu_custom_call.1} parent=1 // pred_region
      %121 = dma.done [#allocation7], 256
    $region57: #{tpu_custom_call.1} parent=1 // pred_fallthru
      _
    // Predicated region
    $region58: #{tpu_custom_call.1} parent=1 // pred_check
      _
    $region59: #{tpu_custom_call.1} parent=1 // pred_check_branch
      %123 = sbr.rel (0) target = $region61
    $region60: #{tpu_custom_call.1} parent=1 // pred_region
      %124 = dma.done [#allocation7], 256
    $region61: #{tpu_custom_call.1} parent=1 // pred_fallthru
      _
    // Predicated region
    $region62: #{tpu_custom_call.1} parent=1 // pred_check
      _
    $region63: #{tpu_custom_call.1} parent=1 // pred_check_branch
      %126 = sbr.rel (0) target = $region65
    $region64: #{tpu_custom_call.1} parent=1 // pred_region
      %127 = dma.done [#allocation10], 256
    $region65: #{tpu_custom_call.1} parent=1 // pred_fallthru
      _
    // Predicated region
    $region66: #{tpu_custom_call.1} parent=1 // pred_check
      _
    $region67: #{tpu_custom_call.1} parent=1 // pred_check_branch
      %129 = sbr.rel (0) target = $region69
    $region68: #{tpu_custom_call.1} parent=1 // pred_region
      %130 = dma.done [#allocation10], 512
    $region69: #{tpu_custom_call.1} parent=1 // pred_fallthru
      _
    // Predicated region
    $region70: #{tpu_custom_call.1} parent=1 // pred_check
      _
    $region71: #{tpu_custom_call.1} parent=1 // pred_check_branch
      %132 = sbr.rel (0) target = $region73
    $region72: #{tpu_custom_call.1} parent=1 // pred_region
      %133 = dma.done [#allocation13], 512
    $region73: #{tpu_custom_call.1} parent=1 // pred_fallthru
      _
    // Predicated region
    $region74: #{tpu_custom_call.1} parent=1 // pred_check
      _
    $region75: #{tpu_custom_call.1} parent=1 // pred_check_branch
      %135 = sbr.rel (0) target = $region77
    $region76: #{tpu_custom_call.1} parent=1 // pred_region
      %136 = dma.done [#allocation13], 512
    $region77: #{tpu_custom_call.1} parent=1 // pred_fallthru
      _
    %v137 = vld [vmem:[#allocation3] sm:$0xff]
    %v138 = vld [vmem:[#allocation3 + $0x8] sm:$0xff]
    %v139 = vld [vmem:[#allocation6] sm:$0xff]
    %v140 = vld [vmem:[#allocation6 + $0x8] sm:$0xff]
    %v141 = vld [vmem:[#allocation8] sm:$0xff]
    %v142 = vld [vmem:[#allocation8 + $0x8] sm:$0xff]
    %v143 = vld [vmem:[#allocation11] sm:$0xff]
    %v144 = vld [vmem:[#allocation11 + $0x8] sm:$0xff]
    %v145 = vld [vmem:[#allocation11 + $0x10] sm:$0xff]
    %v146 = vld [vmem:[#allocation11 + $0x18] sm:$0xff]
    %v147 = vld [vmem:[%s5] sm:$0x1]
    %v149 = vlaneseq
    %v150 = vshrl.u32 %v149, 7
    %v151 = vsub.s32 0, %v150
    %v152 = vrot.slane %v147, %v151
    %vm154 = vcmask 261120
    %v156 = vsel %vm154, %v137, 0
    %v159 = vsel %vm154, %v138, 0
    %161 = vmatprep.subr.mxu0 0.0
    %162 = vmatpush1.msra.mxu0 %v143
    %163 = vmatprep.subr.mxu0 0.0
    %164 = vmatpush1.msra.mxu0 %v144
    %165 = vmatprep.subr.mxu0 0.0
    %166 = vmatpush1.msra.mxu0 %v145
    %167 = vmatprep.subr.mxu0 0.0
    %168 = vmatpush1.msra.mxu0 %v146
    %169 = vmatprep.subr.mxu0 0.0
    %170 = vmatpush1.msra.mxu0 0.0
    %171 = vmatprep.subr.mxu0 0.0
    %172 = vmatpush1.msra.mxu0 0.0
    %173 = vmatprep.subr.mxu0 0.0
    %174 = vmatpush1.msra.mxu0 0.0
    %175 = vmatprep.subr.mxu0 0.0
    %176 = vmatpush1.msra.mxu0 0.0
    %177 = vmatprep.subr.mxu0 0.0
    %178 = vmatpush1.msra.mxu0 0.0
    %179 = vmatprep.subr.mxu0 0.0
    %180 = vmatpush1.msra.mxu0 0.0
    %181 = vmatprep.subr.mxu0 0.0
    %182 = vmatpush1.msra.mxu0 0.0
    %183 = vmatprep.subr.mxu0 0.0
    %184 = vmatpush1.msra.mxu0 0.0
    %185 = vmatprep.subr.mxu0 0.0
    %186 = vmatpush1.msra.mxu0 0.0
    %187 = vmatprep.subr.mxu0 0.0
    %188 = vmatpush1.msra.mxu0 0.0
    %189 = vmatprep.subr.mxu0 0.0
    %190 = vmatpush1.msra.mxu0 0.0
    %191 = vmatprep.subr.mxu0 0.0
    %192 = vmatpush1.msra.mxu0 0.0
    %193 = vmatprep.subr.mxu0 0.0
    %194 = vmatpush1.msra.mxu0 0.0
    %195 = vmatprep.subr.mxu0 0.0
    %196 = vmatpush1.msra.mxu0 0.0
    %197 = vmatprep.subr.mxu0 0.0
    %198 = vmatpush1.msra.mxu0 0.0
    %199 = vmatprep.subr.mxu0 0.0
    %200 = vmatpush1.msra.mxu0 0.0
    %201 = vmatprep.subr.mxu0 0.0
    %202 = vmatpush1.msra.mxu0 0.0
    %203 = vmatprep.subr.mxu0 0.0
    %204 = vmatpush1.msra.mxu0 0.0
    %205 = vmatprep.subr.mxu0 0.0
    %206 = vmatpush1.msra.mxu0 0.0
    %207 = vmatprep.subr.mxu0 0.0
    %208 = vmatpush1.msra.mxu0 0.0
    %209 = vmatprep.subr.mxu0 0.0
    %210 = vmatpush1.msra.mxu0 0.0
    %211 = vmatprep.subr.mxu0 0.0
    %212 = vmatpush1.msra.mxu0 0.0
    %213 = vmatprep.subr.mxu0 0.0
    %214 = vmatpush1.msra.mxu0 0.0
    %215 = vmatprep.subr.mxu0 0.0
    %216 = vmatpush1.msra.mxu0 0.0
    %217 = vmatprep.subr.mxu0 0.0
    %218 = vmatpush1.msra.mxu0 0.0
    %219 = vmatprep.subr.mxu0 0.0
    %220 = vmatpush1.msra.mxu0 0.0
    %221 = vmatprep.subr.mxu0 0.0
    %222 = vmatpush1.msra.mxu0 0.0
    %223 = vmatprep.subr.mxu0 0.0
    %224 = vmatpush1.msra.mxu0 0.0
    %225 = vmatprep.mubr.f32.mxu0 0.0
    %226 = vmatmul.mubr.f32.gmra.mrb[0].mxu0 %v156
    %v227 = vpop.f32.mrb[0].mxu0
    %v228 = vadd.f32 %v152, %v227
    %v229 = vpop.f32.mrb[0].mxu0
    %230 = vmatprep.mubr.f32.mxu0 0.0
    %231 = vmatmul.mubr.f32.gmra.mrb[0].mxu0 %v159
    %v232 = vpop.f32.mrb[0].mxu0
    %v233 = vadd.f32 %v152, %v232
    %v234 = vpop.f32.mrb[0].mxu0
    %235 = vdwg.mxu0
    %v236 = vld [vmem:[#allocation12] sm:$0xff]
    %v237 = vld [vmem:[#allocation12 + $0x8] sm:$0xff]
    %v238 = vld [vmem:[#allocation12 + $0x10] sm:$0xff]
    %v239 = vld [vmem:[#allocation12 + $0x18] sm:$0xff]
    %v240 = vld [vmem:[%s7] sm:$0x1]
    %v242 = vlaneseq
    %v243 = vshrl.u32 %v242, 7
    %v244 = vsub.s32 0, %v243
    %v245 = vrot.slane %v240, %v244
    %v248 = vsel %vm154, %v139, 0
    %v251 = vsel %vm154, %v140, 0
    %253 = vmatprep.subr.mxu0 0.0
    %254 = vmatpush1.msra.mxu0 %v236
    %255 = vmatprep.subr.mxu0 0.0
    %256 = vmatpush1.msra.mxu0 %v237
    %257 = vmatprep.subr.mxu0 0.0
    %258 = vmatpush1.msra.mxu0 %v238
    %259 = vmatprep.subr.mxu0 0.0
    %260 = vmatpush1.msra.mxu0 %v239
    %261 = vmatprep.subr.mxu0 0.0
    %262 = vmatpush1.msra.mxu0 0.0
    %263 = vmatprep.subr.mxu0 0.0
    %264 = vmatpush1.msra.mxu0 0.0
    %265 = vmatprep.subr.mxu0 0.0
    %266 = vmatpush1.msra.mxu0 0.0
    %267 = vmatprep.subr.mxu0 0.0
    %268 = vmatpush1.msra.mxu0 0.0
    %269 = vmatprep.subr.mxu0 0.0
    %270 = vmatpush1.msra.mxu0 0.0
    %271 = vmatprep.subr.mxu0 0.0
    %272 = vmatpush1.msra.mxu0 0.0
    %273 = vmatprep.subr.mxu0 0.0
    %274 = vmatpush1.msra.mxu0 0.0
    %275 = vmatprep.subr.mxu0 0.0
    %276 = vmatpush1.msra.mxu0 0.0
    %277 = vmatprep.subr.mxu0 0.0
    %278 = vmatpush1.msra.mxu0 0.0
    %279 = vmatprep.subr.mxu0 0.0
    %280 = vmatpush1.msra.mxu0 0.0
    %281 = vmatprep.subr.mxu0 0.0
    %282 = vmatpush1.msra.mxu0 0.0
    %283 = vmatprep.subr.mxu0 0.0
    %284 = vmatpush1.msra.mxu0 0.0
    %285 = vmatprep.subr.mxu0 0.0
    %286 = vmatpush1.msra.mxu0 0.0
    %287 = vmatprep.subr.mxu0 0.0
    %288 = vmatpush1.msra.mxu0 0.0
    %289 = vmatprep.subr.mxu0 0.0
    %290 = vmatpush1.msra.mxu0 0.0
    %291 = vmatprep.subr.mxu0 0.0
    %292 = vmatpush1.msra.mxu0 0.0
    %293 = vmatprep.subr.mxu0 0.0
    %294 = vmatpush1.msra.mxu0 0.0
    %295 = vmatprep.subr.mxu0 0.0
    %296 = vmatpush1.msra.mxu0 0.0
    %297 = vmatprep.subr.mxu0 0.0
    %298 = vmatpush1.msra.mxu0 0.0
    %299 = vmatprep.subr.mxu0 0.0
    %300 = vmatpush1.msra.mxu0 0.0
    %301 = vmatprep.subr.mxu0 0.0
    %302 = vmatpush1.msra.mxu0 0.0
    %303 = vmatprep.subr.mxu0 0.0
    %304 = vmatpush1.msra.mxu0 0.0
    %305 = vmatprep.subr.mxu0 0.0
    %306 = vmatpush1.msra.mxu0 0.0
    %307 = vmatprep.subr.mxu0 0.0
    %308 = vmatpush1.msra.mxu0 0.0
    %309 = vmatprep.subr.mxu0 0.0
    %310 = vmatpush1.msra.mxu0 0.0
    %311 = vmatprep.subr.mxu0 0.0
    %312 = vmatpush1.msra.mxu0 0.0
    %313 = vmatprep.subr.mxu0 0.0
    %314 = vmatpush1.msra.mxu0 0.0
    %315 = vmatprep.subr.mxu0 0.0
    %316 = vmatpush1.msra.mxu0 0.0
    %317 = vmatprep.mubr.f32.mxu0 0.0
    %318 = vmatmul.mubr.f32.gmra.mrb[0].mxu0 %v248
    %v319 = vpop.f32.mrb[0].mxu0
    %v320 = vadd.f32 %v245, %v319
    %v321 = vpop.f32.mrb[0].mxu0
    %322 = vmatprep.mubr.f32.mxu0 0.0
    %323 = vmatmul.mubr.f32.gmra.mrb[0].mxu0 %v251
    %v324 = vpop.f32.mrb[0].mxu0
    %v325 = vadd.f32 %v245, %v324
    %v326 = vpop.f32.mrb[0].mxu0
    %327 = vdwg.mxu0
    %v328 = vld [vmem:[#allocation14] sm:$0xff]
    %v329 = vld [vmem:[#allocation14 + $0x8] sm:$0xff]
    %v330 = vld [vmem:[#allocation14 + $0x10] sm:$0xff]
    %v331 = vld [vmem:[#allocation14 + $0x18] sm:$0xff]
    %v332 = vld [vmem:[%s9] sm:$0x1]
    %v334 = vlaneseq
    %v335 = vshrl.u32 %v334, 7
    %v336 = vsub.s32 0, %v335
    %v337 = vrot.slane %v332, %v336
    %v340 = vsel %vm154, %v141, 0
    %v343 = vsel %vm154, %v142, 0
    %345 = vmatprep.subr.mxu0 0.0
    %346 = vmatpush1.msra.mxu0 %v328
    %347 = vmatprep.subr.mxu0 0.0
    %348 = vmatpush1.msra.mxu0 %v329
    %349 = vmatprep.subr.mxu0 0.0
    %350 = vmatpush1.msra.mxu0 %v330
    %351 = vmatprep.subr.mxu0 0.0
    %352 = vmatpush1.msra.mxu0 %v331
    %353 = vmatprep.subr.mxu0 0.0
    %354 = vmatpush1.msra.mxu0 0.0
    %355 = vmatprep.subr.mxu0 0.0
    %356 = vmatpush1.msra.mxu0 0.0
    %357 = vmatprep.subr.mxu0 0.0
    %358 = vmatpush1.msra.mxu0 0.0
    %359 = vmatprep.subr.mxu0 0.0
    %360 = vmatpush1.msra.mxu0 0.0
    %361 = vmatprep.subr.mxu0 0.0
    %362 = vmatpush1.msra.mxu0 0.0
    %363 = vmatprep.subr.mxu0 0.0
    %364 = vmatpush1.msra.mxu0 0.0
    %365 = vmatprep.subr.mxu0 0.0
    %366 = vmatpush1.msra.mxu0 0.0
    %367 = vmatprep.subr.mxu0 0.0
    %368 = vmatpush1.msra.mxu0 0.0
    %369 = vmatprep.subr.mxu0 0.0
    %370 = vmatpush1.msra.mxu0 0.0
    %371 = vmatprep.subr.mxu0 0.0
    %372 = vmatpush1.msra.mxu0 0.0
    %373 = vmatprep.subr.mxu0 0.0
    %374 = vmatpush1.msra.mxu0 0.0
    %375 = vmatprep.subr.mxu0 0.0
    %376 = vmatpush1.msra.mxu0 0.0
    %377 = vmatprep.subr.mxu0 0.0
    %378 = vmatpush1.msra.mxu0 0.0
    %379 = vmatprep.subr.mxu0 0.0
    %380 = vmatpush1.msra.mxu0 0.0
    %381 = vmatprep.subr.mxu0 0.0
    %382 = vmatpush1.msra.mxu0 0.0
    %383 = vmatprep.subr.mxu0 0.0
    %384 = vmatpush1.msra.mxu0 0.0
    %385 = vmatprep.subr.mxu0 0.0
    %386 = vmatpush1.msra.mxu0 0.0
    %387 = vmatprep.subr.mxu0 0.0
    %388 = vmatpush1.msra.mxu0 0.0
    %389 = vmatprep.subr.mxu0 0.0
    %390 = vmatpush1.msra.mxu0 0.0
    %391 = vmatprep.subr.mxu0 0.0
    %392 = vmatpush1.msra.mxu0 0.0
    %393 = vmatprep.subr.mxu0 0.0
    %394 = vmatpush1.msra.mxu0 0.0
    %395 = vmatprep.subr.mxu0 0.0
    %396 = vmatpush1.msra.mxu0 0.0
    %397 = vmatprep.subr.mxu0 0.0
    %398 = vmatpush1.msra.mxu0 0.0
    %399 = vmatprep.subr.mxu0 0.0
    %400 = vmatpush1.msra.mxu0 0.0
    %401 = vmatprep.subr.mxu0 0.0
    %402 = vmatpush1.msra.mxu0 0.0
    %403 = vmatprep.subr.mxu0 0.0
    %404 = vmatpush1.msra.mxu0 0.0
    %405 = vmatprep.subr.mxu0 0.0
    %406 = vmatpush1.msra.mxu0 0.0
    %407 = vmatprep.subr.mxu0 0.0
    %408 = vmatpush1.msra.mxu0 0.0
    %409 = vmatprep.mubr.f32.mxu0 0.0
    %410 = vmatmul.mubr.f32.gmra.mrb[0].mxu0 %v340
    %v411 = vpop.f32.mrb[0].mxu0
    %v412 = vadd.f32 %v337, %v411
    %v413 = vpop.f32.mrb[0].mxu0
    %414 = vmatprep.mubr.f32.mxu0 0.0
    %415 = vmatmul.mubr.f32.gmra.mrb[0].mxu0 %v343
    %v416 = vpop.f32.mrb[0].mxu0
    %v417 = vadd.f32 %v337, %v416
    %v418 = vpop.f32.mrb[0].mxu0
    %419 = vdwg.mxu0
    %v420 = vmul.f32 %v228, 0.35355338
    %v421 = vmul.f32 %v233, 0.35355338
    %v422 = vld [vmem:[#allocation9] sm:$0xff]
    %v423 = vld [vmem:[#allocation9 + $0x8] sm:$0xff]
    %vm424 = vcmp.ne.f32.partialorder %v422, 0.0
    %vm425 = vcmp.ne.f32.partialorder %v423, 0.0
    %v426 = vsel %vm424, 0.0, -1e+09
    %v427 = vsel %vm425, 0.0, -1e+09
    %vm428 = vcmask 64512
    %v430 = vsel %vm428, %v420, 0
    %v433 = vsel %vm428, %v320, 0
    %435 = vmatprep.subr.mxu0 0.0
    %436 = vmatpush1.xpose.msra.mxu0 %v433
    %437 = vmatprep.subr.mxu0 0.0
    %438 = vmatpush1.xpose.msra.mxu0 0.0
    %439 = vmatprep.subr.mxu0 0.0
    %440 = vmatpush1.xpose.msra.mxu0 0.0
    %441 = vmatprep.subr.mxu0 0.0
    %442 = vmatpush1.xpose.msra.mxu0 0.0
    %443 = vmatprep.subr.mxu0 0.0
    %444 = vmatpush1.xpose.msra.mxu0 0.0
    %445 = vmatprep.subr.mxu0 0.0
    %446 = vmatpush1.xpose.msra.mxu0 0.0
    %447 = vmatprep.subr.mxu0 0.0
    %448 = vmatpush1.xpose.msra.mxu0 0.0
    %449 = vmatprep.subr.mxu0 0.0
    %450 = vmatpush1.xpose.msra.mxu0 0.0
    %451 = vmatprep.subr.mxu0 0.0
    %452 = vmatpush1.xpose.msra.mxu0 0.0
    %453 = vmatprep.subr.mxu0 0.0
    %454 = vmatpush1.xpose.msra.mxu0 0.0
    %455 = vmatprep.subr.mxu0 0.0
    %456 = vmatpush1.xpose.msra.mxu0 0.0
    %457 = vmatprep.subr.mxu0 0.0
    %458 = vmatpush1.xpose.msra.mxu0 0.0
    %459 = vmatprep.subr.mxu0 0.0
    %460 = vmatpush1.xpose.msra.mxu0 0.0
    %461 = vmatprep.subr.mxu0 0.0
    %462 = vmatpush1.xpose.msra.mxu0 0.0
    %463 = vmatprep.subr.mxu0 0.0
    %464 = vmatpush1.xpose.msra.mxu0 0.0
    %465 = vmatprep.subr.mxu0 0.0
    %466 = vmatpush1.xpose.msra.mxu0 0.0
    %467 = vmatprep.subr.mxu0 0.0
    %468 = vmatpush1.xpose.msra.mxu0 0.0
    %469 = vmatprep.subr.mxu0 0.0
    %470 = vmatpush1.xpose.msra.mxu0 0.0
    %471 = vmatprep.subr.mxu0 0.0
    %472 = vmatpush1.xpose.msra.mxu0 0.0
    %473 = vmatprep.subr.mxu0 0.0
    %474 = vmatpush1.xpose.msra.mxu0 0.0
    %475 = vmatprep.subr.mxu0 0.0
    %476 = vmatpush1.xpose.msra.mxu0 0.0
    %477 = vmatprep.subr.mxu0 0.0
    %478 = vmatpush1.xpose.msra.mxu0 0.0
    %479 = vmatprep.subr.mxu0 0.0
    %480 = vmatpush1.xpose.msra.mxu0 0.0
    %481 = vmatprep.subr.mxu0 0.0
    %482 = vmatpush1.xpose.msra.mxu0 0.0
    %483 = vmatprep.subr.mxu0 0.0
    %484 = vmatpush1.xpose.msra.mxu0 0.0
    %485 = vmatprep.subr.mxu0 0.0
    %486 = vmatpush1.xpose.msra.mxu0 0.0
    %487 = vmatprep.subr.mxu0 0.0
    %488 = vmatpush1.xpose.msra.mxu0 0.0
    %489 = vmatprep.subr.mxu0 0.0
    %490 = vmatpush1.xpose.msra.mxu0 0.0
    %491 = vmatprep.subr.mxu0 0.0
    %492 = vmatpush1.xpose.msra.mxu0 0.0
    %493 = vmatprep.subr.mxu0 0.0
    %494 = vmatpush1.xpose.msra.mxu0 0.0
    %495 = vmatprep.subr.mxu0 0.0
    %496 = vmatpush1.xpose.msra.mxu0 0.0
    %497 = vmatprep.subr.mxu0 0.0
    %498 = vmatpush1.xpose.msra.mxu0 0.0
    %499 = vmatprep.mubr.f32.mxu0 0.0
    %500 = vmatmul.mubr.f32.gmra.mrb[0].mxu0 %v430
    %v501 = vpop.f32.mrb[0].mxu0
    %v502 = vadd.f32 %v426, %v501
    %v503 = vpop.f32.mrb[0].mxu0
    %504 = vdwg.mxu0
    %v506 = vsel %vm428, %v421, 0
    %v509 = vsel %vm428, %v325, 0
    %511 = vmatprep.subr.mxu0 0.0
    %512 = vmatpush1.xpose.msra.mxu0 %v509
    %513 = vmatprep.subr.mxu0 0.0
    %514 = vmatpush1.xpose.msra.mxu0 0.0
    %515 = vmatprep.subr.mxu0 0.0
    %516 = vmatpush1.xpose.msra.mxu0 0.0
    %517 = vmatprep.subr.mxu0 0.0
    %518 = vmatpush1.xpose.msra.mxu0 0.0
    %519 = vmatprep.subr.mxu0 0.0
    %520 = vmatpush1.xpose.msra.mxu0 0.0
    %521 = vmatprep.subr.mxu0 0.0
    %522 = vmatpush1.xpose.msra.mxu0 0.0
    %523 = vmatprep.subr.mxu0 0.0
    %524 = vmatpush1.xpose.msra.mxu0 0.0
    %525 = vmatprep.subr.mxu0 0.0
    %526 = vmatpush1.xpose.msra.mxu0 0.0
    %527 = vmatprep.subr.mxu0 0.0
    %528 = vmatpush1.xpose.msra.mxu0 0.0
    %529 = vmatprep.subr.mxu0 0.0
    %530 = vmatpush1.xpose.msra.mxu0 0.0
    %531 = vmatprep.subr.mxu0 0.0
    %532 = vmatpush1.xpose.msra.mxu0 0.0
    %533 = vmatprep.subr.mxu0 0.0
    %534 = vmatpush1.xpose.msra.mxu0 0.0
    %535 = vmatprep.subr.mxu0 0.0
    %536 = vmatpush1.xpose.msra.mxu0 0.0
    %537 = vmatprep.subr.mxu0 0.0
    %538 = vmatpush1.xpose.msra.mxu0 0.0
    %539 = vmatprep.subr.mxu0 0.0
    %540 = vmatpush1.xpose.msra.mxu0 0.0
    %541 = vmatprep.subr.mxu0 0.0
    %542 = vmatpush1.xpose.msra.mxu0 0.0
    %543 = vmatprep.subr.mxu0 0.0
    %544 = vmatpush1.xpose.msra.mxu0 0.0
    %545 = vmatprep.subr.mxu0 0.0
    %546 = vmatpush1.xpose.msra.mxu0 0.0
    %547 = vmatprep.subr.mxu0 0.0
    %548 = vmatpush1.xpose.msra.mxu0 0.0
    %549 = vmatprep.subr.mxu0 0.0
    %550 = vmatpush1.xpose.msra.mxu0 0.0
    %551 = vmatprep.subr.mxu0 0.0
    %552 = vmatpush1.xpose.msra.mxu0 0.0
    %553 = vmatprep.subr.mxu0 0.0
    %554 = vmatpush1.xpose.msra.mxu0 0.0
    %555 = vmatprep.subr.mxu0 0.0
    %556 = vmatpush1.xpose.msra.mxu0 0.0
    %557 = vmatprep.subr.mxu0 0.0
    %558 = vmatpush1.xpose.msra.mxu0 0.0
    %559 = vmatprep.subr.mxu0 0.0
    %560 = vmatpush1.xpose.msra.mxu0 0.0
    %561 = vmatprep.subr.mxu0 0.0
    %562 = vmatpush1.xpose.msra.mxu0 0.0
    %563 = vmatprep.subr.mxu0 0.0
    %564 = vmatpush1.xpose.msra.mxu0 0.0
    %565 = vmatprep.subr.mxu0 0.0
    %566 = vmatpush1.xpose.msra.mxu0 0.0
    %567 = vmatprep.subr.mxu0 0.0
    %568 = vmatpush1.xpose.msra.mxu0 0.0
    %569 = vmatprep.subr.mxu0 0.0
    %570 = vmatpush1.xpose.msra.mxu0 0.0
    %571 = vmatprep.subr.mxu0 0.0
    %572 = vmatpush1.xpose.msra.mxu0 0.0
    %573 = vmatprep.subr.mxu0 0.0
    %574 = vmatpush1.xpose.msra.mxu0 0.0
    %575 = vmatprep.mubr.f32.mxu0 0.0
    %576 = vmatmul.mubr.f32.gmra.mrb[0].mxu0 %v506
    %v577 = vpop.f32.mrb[0].mxu0
    %v578 = vadd.f32 %v427, %v577
    %v579 = vpop.f32.mrb[0].mxu0
    %580 = vdwg.mxu0
    %v581 = vsel %vm428, %v502, -inf
    %582 = vmax.xlane.f32.xlu0 %v581
    %v583 = vpop.xlane.xlu0 %582
    %v584 = vsel %vm428, %v578, -inf
    %585 = vmax.xlane.f32.xlu0 %v584
    %v586 = vpop.xlane.xlu0 %585
    %v587 = vsub.f32 %v502, %v583
    %v588 = vsub.f32 %v578, %v586
    %v589 = vmul.f32 %v587, 1.442695
    %v590 = vpow.pop %v589
    %v591 = vmul.f32 %v588, 1.442695
    %v592 = vpow.pop %v591
    %v593 = vsel %vm428, %v590, 0.0
    %594 = vadd.xlane.f32.xlu0 %v593
    %v595 = vpop.xlane.xlu0 %594
    %v596 = vsel %vm428, %v592, 0.0
    %597 = vadd.xlane.f32.xlu0 %v596
    %v598 = vpop.xlane.xlu0 %597
    %v599 = vrcp.pop %v595
    %v600 = vrcp.pop %v598
    %v601 = vmul.f32 %v590, %v599
    %v602 = vmul.f32 %v592, %v600
    %v604 = vsel %vm428, %v601, 0
    %606 = vmatprep.subr.mxu0 0.0
    %607 = vmatpush1.msra.mxu0 %v412
    %608 = vmatprep.subr.mxu0 0.0
    %609 = vmatpush1.msra.mxu0 0.0
    %610 = vmatprep.subr.mxu0 0.0
    %611 = vmatpush1.msra.mxu0 0.0
    %612 = vmatprep.subr.mxu0 0.0
    %613 = vmatpush1.msra.mxu0 0.0
    %614 = vmatprep.subr.mxu0 0.0
    %615 = vmatpush1.msra.mxu0 0.0
    %616 = vmatprep.subr.mxu0 0.0
    %617 = vmatpush1.msra.mxu0 0.0
    %618 = vmatprep.subr.mxu0 0.0
    %619 = vmatpush1.msra.mxu0 0.0
    %620 = vmatprep.subr.mxu0 0.0
    %621 = vmatpush1.msra.mxu0 0.0
    %622 = vmatprep.subr.mxu0 0.0
    %623 = vmatpush1.msra.mxu0 0.0
    %624 = vmatprep.subr.mxu0 0.0
    %625 = vmatpush1.msra.mxu0 0.0
    %626 = vmatprep.subr.mxu0 0.0
    %627 = vmatpush1.msra.mxu0 0.0
    %628 = vmatprep.subr.mxu0 0.0
    %629 = vmatpush1.msra.mxu0 0.0
    %630 = vmatprep.subr.mxu0 0.0
    %631 = vmatpush1.msra.mxu0 0.0
    %632 = vmatprep.subr.mxu0 0.0
    %633 = vmatpush1.msra.mxu0 0.0
    %634 = vmatprep.subr.mxu0 0.0
    %635 = vmatpush1.msra.mxu0 0.0
    %636 = vmatprep.subr.mxu0 0.0
    %637 = vmatpush1.msra.mxu0 0.0
    %638 = vmatprep.subr.mxu0 0.0
    %639 = vmatpush1.msra.mxu0 0.0
    %640 = vmatprep.subr.mxu0 0.0
    %641 = vmatpush1.msra.mxu0 0.0
    %642 = vmatprep.subr.mxu0 0.0
    %643 = vmatpush1.msra.mxu0 0.0
    %644 = vmatprep.subr.mxu0 0.0
    %645 = vmatpush1.msra.mxu0 0.0
    %646 = vmatprep.subr.mxu0 0.0
    %647 = vmatpush1.msra.mxu0 0.0
    %648 = vmatprep.subr.mxu0 0.0
    %649 = vmatpush1.msra.mxu0 0.0
    %650 = vmatprep.subr.mxu0 0.0
    %651 = vmatpush1.msra.mxu0 0.0
    %652 = vmatprep.subr.mxu0 0.0
    %653 = vmatpush1.msra.mxu0 0.0
    %654 = vmatprep.subr.mxu0 0.0
    %655 = vmatpush1.msra.mxu0 0.0
    %656 = vmatprep.subr.mxu0 0.0
    %657 = vmatpush1.msra.mxu0 0.0
    %658 = vmatprep.subr.mxu0 0.0
    %659 = vmatpush1.msra.mxu0 0.0
    %660 = vmatprep.subr.mxu0 0.0
    %661 = vmatpush1.msra.mxu0 0.0
    %662 = vmatprep.subr.mxu0 0.0
    %663 = vmatpush1.msra.mxu0 0.0
    %664 = vmatprep.subr.mxu0 0.0
    %665 = vmatpush1.msra.mxu0 0.0
    %666 = vmatprep.subr.mxu0 0.0
    %667 = vmatpush1.msra.mxu0 0.0
    %668 = vmatprep.subr.mxu0 0.0
    %669 = vmatpush1.msra.mxu0 0.0
    %670 = vmatprep.mubr.f32.mxu0 0.0
    %671 = vmatmul.mubr.f32.gmra.mrb[0].mxu0 %v604
    %v672 = vpop.f32.mrb[0].mxu0
    %v673 = vadd.f32 0.0, %v672
    %v674 = vpop.f32.mrb[0].mxu0
    %675 = vdwg.mxu0
    %v677 = vsel %vm428, %v602, 0
    %679 = vmatprep.subr.mxu0 0.0
    %680 = vmatpush1.msra.mxu0 %v417
    %681 = vmatprep.subr.mxu0 0.0
    %682 = vmatpush1.msra.mxu0 0.0
    %683 = vmatprep.subr.mxu0 0.0
    %684 = vmatpush1.msra.mxu0 0.0
    %685 = vmatprep.subr.mxu0 0.0
    %686 = vmatpush1.msra.mxu0 0.0
    %687 = vmatprep.subr.mxu0 0.0
    %688 = vmatpush1.msra.mxu0 0.0
    %689 = vmatprep.subr.mxu0 0.0
    %690 = vmatpush1.msra.mxu0 0.0
    %691 = vmatprep.subr.mxu0 0.0
    %692 = vmatpush1.msra.mxu0 0.0
    %693 = vmatprep.subr.mxu0 0.0
    %694 = vmatpush1.msra.mxu0 0.0
    %695 = vmatprep.subr.mxu0 0.0
    %696 = vmatpush1.msra.mxu0 0.0
    %697 = vmatprep.subr.mxu0 0.0
    %698 = vmatpush1.msra.mxu0 0.0
    %699 = vmatprep.subr.mxu0 0.0
    %700 = vmatpush1.msra.mxu0 0.0
    %701 = vmatprep.subr.mxu0 0.0
    %702 = vmatpush1.msra.mxu0 0.0
    %703 = vmatprep.subr.mxu0 0.0
    %704 = vmatpush1.msra.mxu0 0.0
    %705 = vmatprep.subr.mxu0 0.0
    %706 = vmatpush1.msra.mxu0 0.0
    %707 = vmatprep.subr.mxu0 0.0
    %708 = vmatpush1.msra.mxu0 0.0
    %709 = vmatprep.subr.mxu0 0.0
    %710 = vmatpush1.msra.mxu0 0.0
    %711 = vmatprep.subr.mxu0 0.0
    %712 = vmatpush1.msra.mxu0 0.0
    %713 = vmatprep.subr.mxu0 0.0
    %714 = vmatpush1.msra.mxu0 0.0
    %715 = vmatprep.subr.mxu0 0.0
    %716 = vmatpush1.msra.mxu0 0.0
    %717 = vmatprep.subr.mxu0 0.0
    %718 = vmatpush1.msra.mxu0 0.0
    %719 = vmatprep.subr.mxu0 0.0
    %720 = vmatpush1.msra.mxu0 0.0
    %721 = vmatprep.subr.mxu0 0.0
    %722 = vmatpush1.msra.mxu0 0.0
    %723 = vmatprep.subr.mxu0 0.0
    %724 = vmatpush1.msra.mxu0 0.0
    %725 = vmatprep.subr.mxu0 0.0
    %726 = vmatpush1.msra.mxu0 0.0
    %727 = vmatprep.subr.mxu0 0.0
    %728 = vmatpush1.msra.mxu0 0.0
    %729 = vmatprep.subr.mxu0 0.0
    %730 = vmatpush1.msra.mxu0 0.0
    %731 = vmatprep.subr.mxu0 0.0
    %732 = vmatpush1.msra.mxu0 0.0
    %733 = vmatprep.subr.mxu0 0.0
    %734 = vmatpush1.msra.mxu0 0.0
    %735 = vmatprep.subr.mxu0 0.0
    %736 = vmatpush1.msra.mxu0 0.0
    %737 = vmatprep.subr.mxu0 0.0
    %738 = vmatpush1.msra.mxu0 0.0
    %739 = vmatprep.subr.mxu0 0.0
    %740 = vmatpush1.msra.mxu0 0.0
    %741 = vmatprep.subr.mxu0 0.0
    %742 = vmatpush1.msra.mxu0 0.0
    %743 = vmatprep.mubr.f32.mxu0 0.0
    %744 = vmatmul.mubr.f32.gmra.mrb[0].mxu0 %v677
    %v745 = vpop.f32.mrb[0].mxu0
    %v746 = vadd.f32 0.0, %v745
    %v747 = vpop.f32.mrb[0].mxu0
    %748 = vdwg.mxu0
    %749 = vst.msk [vmem:[#allocation2] sm:$0xff] %vm428, %v673
    %750 = vst.msk [vmem:[#allocation2 + $0x8] sm:$0xff] %vm428, %v746
    %751 = vrot.lane.b32.xlu0 %v420, 120
    %v752 = vpop.permute.xlu0 %751
    %753 = vrot.lane.b32.xlu0 %v320, 120
    %v754 = vpop.permute.xlu0 %753
    %v755 = vsel %vm428, %v752, 0
    %v757 = vsel %vm428, %v754, 0
    %759 = vmatprep.subr.mxu0 0.0
    %760 = vmatpush1.xpose.msra.mxu0 %v757
    %761 = vmatprep.subr.mxu0 0.0
    %762 = vmatpush1.xpose.msra.mxu0 0.0
    %763 = vmatprep.subr.mxu0 0.0
    %764 = vmatpush1.xpose.msra.mxu0 0.0
    %765 = vmatprep.subr.mxu0 0.0
    %766 = vmatpush1.xpose.msra.mxu0 0.0
    %767 = vmatprep.subr.mxu0 0.0
    %768 = vmatpush1.xpose.msra.mxu0 0.0
    %769 = vmatprep.subr.mxu0 0.0
    %770 = vmatpush1.xpose.msra.mxu0 0.0
    %771 = vmatprep.subr.mxu0 0.0
    %772 = vmatpush1.xpose.msra.mxu0 0.0
    %773 = vmatprep.subr.mxu0 0.0
    %774 = vmatpush1.xpose.msra.mxu0 0.0
    %775 = vmatprep.subr.mxu0 0.0
    %776 = vmatpush1.xpose.msra.mxu0 0.0
    %777 = vmatprep.subr.mxu0 0.0
    %778 = vmatpush1.xpose.msra.mxu0 0.0
    %779 = vmatprep.subr.mxu0 0.0
    %780 = vmatpush1.xpose.msra.mxu0 0.0
    %781 = vmatprep.subr.mxu0 0.0
    %782 = vmatpush1.xpose.msra.mxu0 0.0
    %783 = vmatprep.subr.mxu0 0.0
    %784 = vmatpush1.xpose.msra.mxu0 0.0
    %785 = vmatprep.subr.mxu0 0.0
    %786 = vmatpush1.xpose.msra.mxu0 0.0
    %787 = vmatprep.subr.mxu0 0.0
    %788 = vmatpush1.xpose.msra.mxu0 0.0
    %789 = vmatprep.subr.mxu0 0.0
    %790 = vmatpush1.xpose.msra.mxu0 0.0
    %791 = vmatprep.subr.mxu0 0.0
    %792 = vmatpush1.xpose.msra.mxu0 0.0
    %793 = vmatprep.subr.mxu0 0.0
    %794 = vmatpush1.xpose.msra.mxu0 0.0
    %795 = vmatprep.subr.mxu0 0.0
    %796 = vmatpush1.xpose.msra.mxu0 0.0
    %797 = vmatprep.subr.mxu0 0.0
    %798 = vmatpush1.xpose.msra.mxu0 0.0
    %799 = vmatprep.subr.mxu0 0.0
    %800 = vmatpush1.xpose.msra.mxu0 0.0
    %801 = vmatprep.subr.mxu0 0.0
    %802 = vmatpush1.xpose.msra.mxu0 0.0
    %803 = vmatprep.subr.mxu0 0.0
    %804 = vmatpush1.xpose.msra.mxu0 0.0
    %805 = vmatprep.subr.mxu0 0.0
    %806 = vmatpush1.xpose.msra.mxu0 0.0
    %807 = vmatprep.subr.mxu0 0.0
    %808 = vmatpush1.xpose.msra.mxu0 0.0
    %809 = vmatprep.subr.mxu0 0.0
    %810 = vmatpush1.xpose.msra.mxu0 0.0
    %811 = vmatprep.subr.mxu0 0.0
    %812 = vmatpush1.xpose.msra.mxu0 0.0
    %813 = vmatprep.subr.mxu0 0.0
    %814 = vmatpush1.xpose.msra.mxu0 0.0
    %815 = vmatprep.subr.mxu0 0.0
    %816 = vmatpush1.xpose.msra.mxu0 0.0
    %817 = vmatprep.subr.mxu0 0.0
    %818 = vmatpush1.xpose.msra.mxu0 0.0
    %819 = vmatprep.subr.mxu0 0.0
    %820 = vmatpush1.xpose.msra.mxu0 0.0
    %821 = vmatprep.subr.mxu0 0.0
    %822 = vmatpush1.xpose.msra.mxu0 0.0
    %823 = vmatprep.mubr.f32.mxu0 0.0
    %824 = vmatmul.mubr.f32.gmra.mrb[0].mxu0 %v755
    %v825 = vpop.f32.mrb[0].mxu0
    %v826 = vadd.f32 %v426, %v825
    %v827 = vpop.f32.mrb[0].mxu0
    %828 = vdwg.mxu0
    %829 = vrot.lane.b32.xlu0 %v421, 120
    %v830 = vpop.permute.xlu0 %829
    %831 = vrot.lane.b32.xlu0 %v325, 120
    %v832 = vpop.permute.xlu0 %831
    %v833 = vsel %vm428, %v830, 0
    %v835 = vsel %vm428, %v832, 0
    %837 = vmatprep.subr.mxu0 0.0
    %838 = vmatpush1.xpose.msra.mxu0 %v835
    %839 = vmatprep.subr.mxu0 0.0
    %840 = vmatpush1.xpose.msra.mxu0 0.0
    %841 = vmatprep.subr.mxu0 0.0
    %842 = vmatpush1.xpose.msra.mxu0 0.0
    %843 = vmatprep.subr.mxu0 0.0
    %844 = vmatpush1.xpose.msra.mxu0 0.0
    %845 = vmatprep.subr.mxu0 0.0
    %846 = vmatpush1.xpose.msra.mxu0 0.0
    %847 = vmatprep.subr.mxu0 0.0
    %848 = vmatpush1.xpose.msra.mxu0 0.0
    %849 = vmatprep.subr.mxu0 0.0
    %850 = vmatpush1.xpose.msra.mxu0 0.0
    %851 = vmatprep.subr.mxu0 0.0
    %852 = vmatpush1.xpose.msra.mxu0 0.0
    %853 = vmatprep.subr.mxu0 0.0
    %854 = vmatpush1.xpose.msra.mxu0 0.0
    %855 = vmatprep.subr.mxu0 0.0
    %856 = vmatpush1.xpose.msra.mxu0 0.0
    %857 = vmatprep.subr.mxu0 0.0
    %858 = vmatpush1.xpose.msra.mxu0 0.0
    %859 = vmatprep.subr.mxu0 0.0
    %860 = vmatpush1.xpose.msra.mxu0 0.0
    %861 = vmatprep.subr.mxu0 0.0
    %862 = vmatpush1.xpose.msra.mxu0 0.0
    %863 = vmatprep.subr.mxu0 0.0
    %864 = vmatpush1.xpose.msra.mxu0 0.0
    %865 = vmatprep.subr.mxu0 0.0
    %866 = vmatpush1.xpose.msra.mxu0 0.0
    %867 = vmatprep.subr.mxu0 0.0
    %868 = vmatpush1.xpose.msra.mxu0 0.0
    %869 = vmatprep.subr.mxu0 0.0
    %870 = vmatpush1.xpose.msra.mxu0 0.0
    %871 = vmatprep.subr.mxu0 0.0
    %872 = vmatpush1.xpose.msra.mxu0 0.0
    %873 = vmatprep.subr.mxu0 0.0
    %874 = vmatpush1.xpose.msra.mxu0 0.0
    %875 = vmatprep.subr.mxu0 0.0
    %876 = vmatpush1.xpose.msra.mxu0 0.0
    %877 = vmatprep.subr.mxu0 0.0
    %878 = vmatpush1.xpose.msra.mxu0 0.0
    %879 = vmatprep.subr.mxu0 0.0
    %880 = vmatpush1.xpose.msra.mxu0 0.0
    %881 = vmatprep.subr.mxu0 0.0
    %882 = vmatpush1.xpose.msra.mxu0 0.0
    %883 = vmatprep.subr.mxu0 0.0
    %884 = vmatpush1.xpose.msra.mxu0 0.0
    %885 = vmatprep.subr.mxu0 0.0
    %886 = vmatpush1.xpose.msra.mxu0 0.0
    %887 = vmatprep.subr.mxu0 0.0
    %888 = vmatpush1.xpose.msra.mxu0 0.0
    %889 = vmatprep.subr.mxu0 0.0
    %890 = vmatpush1.xpose.msra.mxu0 0.0
    %891 = vmatprep.subr.mxu0 0.0
    %892 = vmatpush1.xpose.msra.mxu0 0.0
    %893 = vmatprep.subr.mxu0 0.0
    %894 = vmatpush1.xpose.msra.mxu0 0.0
    %895 = vmatprep.subr.mxu0 0.0
    %896 = vmatpush1.xpose.msra.mxu0 0.0
    %897 = vmatprep.subr.mxu0 0.0
    %898 = vmatpush1.xpose.msra.mxu0 0.0
    %899 = vmatprep.subr.mxu0 0.0
    %900 = vmatpush1.xpose.msra.mxu0 0.0
    %901 = vmatprep.mubr.f32.mxu0 0.0
    %902 = vmatmul.mubr.f32.gmra.mrb[0].mxu0 %v833
    %v903 = vpop.f32.mrb[0].mxu0
    %v904 = vadd.f32 %v427, %v903
    %v905 = vpop.f32.mrb[0].mxu0
    %906 = vdwg.mxu0
    %v907 = vsel %vm428, %v826, -inf
    %908 = vmax.xlane.f32.xlu0 %v907
    %v909 = vpop.xlane.xlu0 %908
    %v910 = vsel %vm428, %v904, -inf
    %911 = vmax.xlane.f32.xlu0 %v910
    %v912 = vpop.xlane.xlu0 %911
    %v913 = vsub.f32 %v826, %v909
    %v914 = vsub.f32 %v904, %v912
    %v915 = vmul.f32 %v913, 1.442695
    %v916 = vpow.pop %v915
    %v917 = vmul.f32 %v914, 1.442695
    %v918 = vpow.pop %v917
    %v919 = vsel %vm428, %v916, 0.0
    %920 = vadd.xlane.f32.xlu0 %v919
    %v921 = vpop.xlane.xlu0 %920
    %v922 = vsel %vm428, %v918, 0.0
    %923 = vadd.xlane.f32.xlu0 %v922
    %v924 = vpop.xlane.xlu0 %923
    %v925 = vrcp.pop %v921
    %v926 = vrcp.pop %v924
    %v927 = vmul.f32 %v916, %v925
    %v928 = vmul.f32 %v918, %v926
    %930 = vrot.lane.b32.xlu0 %v412, 120
    %v931 = vpop.permute.xlu0 %930
    %v934 = vsel %vm428, %v927, 0
    %936 = vmatprep.subr.mxu0 0.0
    %937 = vmatpush1.msra.mxu0 %v931
    %938 = vmatprep.subr.mxu0 0.0
    %939 = vmatpush1.msra.mxu0 0.0
    %940 = vmatprep.subr.mxu0 0.0
    %941 = vmatpush1.msra.mxu0 0.0
    %942 = vmatprep.subr.mxu0 0.0
    %943 = vmatpush1.msra.mxu0 0.0
    %944 = vmatprep.subr.mxu0 0.0
    %945 = vmatpush1.msra.mxu0 0.0
    %946 = vmatprep.subr.mxu0 0.0
    %947 = vmatpush1.msra.mxu0 0.0
    %948 = vmatprep.subr.mxu0 0.0
    %949 = vmatpush1.msra.mxu0 0.0
    %950 = vmatprep.subr.mxu0 0.0
    %951 = vmatpush1.msra.mxu0 0.0
    %952 = vmatprep.subr.mxu0 0.0
    %953 = vmatpush1.msra.mxu0 0.0
    %954 = vmatprep.subr.mxu0 0.0
    %955 = vmatpush1.msra.mxu0 0.0
    %956 = vmatprep.subr.mxu0 0.0
    %957 = vmatpush1.msra.mxu0 0.0
    %958 = vmatprep.subr.mxu0 0.0
    %959 = vmatpush1.msra.mxu0 0.0
    %960 = vmatprep.subr.mxu0 0.0
    %961 = vmatpush1.msra.mxu0 0.0
    %962 = vmatprep.subr.mxu0 0.0
    %963 = vmatpush1.msra.mxu0 0.0
    %964 = vmatprep.subr.mxu0 0.0
    %965 = vmatpush1.msra.mxu0 0.0
    %966 = vmatprep.subr.mxu0 0.0
    %967 = vmatpush1.msra.mxu0 0.0
    %968 = vmatprep.subr.mxu0 0.0
    %969 = vmatpush1.msra.mxu0 0.0
    %970 = vmatprep.subr.mxu0 0.0
    %971 = vmatpush1.msra.mxu0 0.0
    %972 = vmatprep.subr.mxu0 0.0
    %973 = vmatpush1.msra.mxu0 0.0
    %974 = vmatprep.subr.mxu0 0.0
    %975 = vmatpush1.msra.mxu0 0.0
    %976 = vmatprep.subr.mxu0 0.0
    %977 = vmatpush1.msra.mxu0 0.0
    %978 = vmatprep.subr.mxu0 0.0
    %979 = vmatpush1.msra.mxu0 0.0
    %980 = vmatprep.subr.mxu0 0.0
    %981 = vmatpush1.msra.mxu0 0.0
    %982 = vmatprep.subr.mxu0 0.0
    %983 = vmatpush1.msra.mxu0 0.0
    %984 = vmatprep.subr.mxu0 0.0
    %985 = vmatpush1.msra.mxu0 0.0
    %986 = vmatprep.subr.mxu0 0.0
    %987 = vmatpush1.msra.mxu0 0.0
    %988 = vmatprep.subr.mxu0 0.0
    %989 = vmatpush1.msra.mxu0 0.0
    %990 = vmatprep.subr.mxu0 0.0
    %991 = vmatpush1.msra.mxu0 0.0
    %992 = vmatprep.subr.mxu0 0.0
    %993 = vmatpush1.msra.mxu0 0.0
    %994 = vmatprep.subr.mxu0 0.0
    %995 = vmatpush1.msra.mxu0 0.0
    %996 = vmatprep.subr.mxu0 0.0
    %997 = vmatpush1.msra.mxu0 0.0
    %998 = vmatprep.subr.mxu0 0.0
    %999 = vmatpush1.msra.mxu0 0.0
    %1000 = vmatprep.mubr.f32.mxu0 0.0
    %1001 = vmatmul.mubr.f32.gmra.mrb[0].mxu0 %v934
    %v1002 = vpop.f32.mrb[0].mxu0
    %v1003 = vadd.f32 0.0, %v1002
    %v1004 = vpop.f32.mrb[0].mxu0
    %1005 = vdwg.mxu0
    %1007 = vrot.lane.b32.xlu0 %v417, 120
    %v1008 = vpop.permute.xlu0 %1007
    %v1011 = vsel %vm428, %v928, 0
    %1013 = vmatprep.subr.mxu0 0.0
    %1014 = vmatpush1.msra.mxu0 %v1008
    %1015 = vmatprep.subr.mxu0 0.0
    %1016 = vmatpush1.msra.mxu0 0.0
    %1017 = vmatprep.subr.mxu0 0.0
    %1018 = vmatpush1.msra.mxu0 0.0
    %1019 = vmatprep.subr.mxu0 0.0
    %1020 = vmatpush1.msra.mxu0 0.0
    %1021 = vmatprep.subr.mxu0 0.0
    %1022 = vmatpush1.msra.mxu0 0.0
    %1023 = vmatprep.subr.mxu0 0.0
    %1024 = vmatpush1.msra.mxu0 0.0
    %1025 = vmatprep.subr.mxu0 0.0
    %1026 = vmatpush1.msra.mxu0 0.0
    %1027 = vmatprep.subr.mxu0 0.0
    %1028 = vmatpush1.msra.mxu0 0.0
    %1029 = vmatprep.subr.mxu0 0.0
    %1030 = vmatpush1.msra.mxu0 0.0
    %1031 = vmatprep.subr.mxu0 0.0
    %1032 = vmatpush1.msra.mxu0 0.0
    %1033 = vmatprep.subr.mxu0 0.0
    %1034 = vmatpush1.msra.mxu0 0.0
    %1035 = vmatprep.subr.mxu0 0.0
    %1036 = vmatpush1.msra.mxu0 0.0
    %1037 = vmatprep.subr.mxu0 0.0
    %1038 = vmatpush1.msra.mxu0 0.0
    %1039 = vmatprep.subr.mxu0 0.0
    %1040 = vmatpush1.msra.mxu0 0.0
    %1041 = vmatprep.subr.mxu0 0.0
    %1042 = vmatpush1.msra.mxu0 0.0
    %1043 = vmatprep.subr.mxu0 0.0
    %1044 = vmatpush1.msra.mxu0 0.0
    %1045 = vmatprep.subr.mxu0 0.0
    %1046 = vmatpush1.msra.mxu0 0.0
    %1047 = vmatprep.subr.mxu0 0.0
    %1048 = vmatpush1.msra.mxu0 0.0
    %1049 = vmatprep.subr.mxu0 0.0
    %1050 = vmatpush1.msra.mxu0 0.0
    %1051 = vmatprep.subr.mxu0 0.0
    %1052 = vmatpush1.msra.mxu0 0.0
    %1053 = vmatprep.subr.mxu0 0.0
    %1054 = vmatpush1.msra.mxu0 0.0
    %1055 = vmatprep.subr.mxu0 0.0
    %1056 = vmatpush1.msra.mxu0 0.0
    %1057 = vmatprep.subr.mxu0 0.0
    %1058 = vmatpush1.msra.mxu0 0.0
    %1059 = vmatprep.subr.mxu0 0.0
    %1060 = vmatpush1.msra.mxu0 0.0
    %1061 = vmatprep.subr.mxu0 0.0
    %1062 = vmatpush1.msra.mxu0 0.0
    %1063 = vmatprep.subr.mxu0 0.0
    %1064 = vmatpush1.msra.mxu0 0.0
    %1065 = vmatprep.subr.mxu0 0.0
    %1066 = vmatpush1.msra.mxu0 0.0
    %1067 = vmatprep.subr.mxu0 0.0
    %1068 = vmatpush1.msra.mxu0 0.0
    %1069 = vmatprep.subr.mxu0 0.0
    %1070 = vmatpush1.msra.mxu0 0.0
    %1071 = vmatprep.subr.mxu0 0.0
    %1072 = vmatpush1.msra.mxu0 0.0
    %1073 = vmatprep.subr.mxu0 0.0
    %1074 = vmatpush1.msra.mxu0 0.0
    %1075 = vmatprep.subr.mxu0 0.0
    %1076 = vmatpush1.msra.mxu0 0.0
    %1077 = vmatprep.mubr.f32.mxu0 0.0
    %1078 = vmatmul.mubr.f32.gmra.mrb[0].mxu0 %v1011
    %v1079 = vpop.f32.mrb[0].mxu0
    %v1080 = vadd.f32 0.0, %v1079
    %v1081 = vpop.f32.mrb[0].mxu0
    %1082 = vdwg.mxu0
    %1085 = vrot.lane.b32.xlu0 %v1003, 8
    %v1086 = vpop.permute.xlu0 %1085
    %1087 = vrot.lane.b32.xlu0 %v1080, 8
    %v1088 = vpop.permute.xlu0 %1087
    %vm1091 = vcmask 130112
    %1092 = vst.msk [vmem:[#allocation2] sm:$0xff] %vm1091, %v1086
    %1093 = vst.msk [vmem:[#allocation2 + $0x8] sm:$0xff] %vm1091, %v1088
    %1094 = vrot.lane.b32.xlu0 %v420, 112
    %v1095 = vpop.permute.xlu0 %1094
    %1096 = vrot.lane.b32.xlu0 %v320, 112
    %v1097 = vpop.permute.xlu0 %1096
    %v1098 = vsel %vm428, %v1095, 0
    %v1100 = vsel %vm428, %v1097, 0
    %1102 = vmatprep.subr.mxu0 0.0
    %1103 = vmatpush1.xpose.msra.mxu0 %v1100
    %1104 = vmatprep.subr.mxu0 0.0
    %1105 = vmatpush1.xpose.msra.mxu0 0.0
    %1106 = vmatprep.subr.mxu0 0.0
    %1107 = vmatpush1.xpose.msra.mxu0 0.0
    %1108 = vmatprep.subr.mxu0 0.0
    %1109 = vmatpush1.xpose.msra.mxu0 0.0
    %1110 = vmatprep.subr.mxu0 0.0
    %1111 = vmatpush1.xpose.msra.mxu0 0.0
    %1112 = vmatprep.subr.mxu0 0.0
    %1113 = vmatpush1.xpose.msra.mxu0 0.0
    %1114 = vmatprep.subr.mxu0 0.0
    %1115 = vmatpush1.xpose.msra.mxu0 0.0
    %1116 = vmatprep.subr.mxu0 0.0
    %1117 = vmatpush1.xpose.msra.mxu0 0.0
    %1118 = vmatprep.subr.mxu0 0.0
    %1119 = vmatpush1.xpose.msra.mxu0 0.0
    %1120 = vmatprep.subr.mxu0 0.0
    %1121 = vmatpush1.xpose.msra.mxu0 0.0
    %1122 = vmatprep.subr.mxu0 0.0
    %1123 = vmatpush1.xpose.msra.mxu0 0.0
    %1124 = vmatprep.subr.mxu0 0.0
    %1125 = vmatpush1.xpose.msra.mxu0 0.0
    %1126 = vmatprep.subr.mxu0 0.0
    %1127 = vmatpush1.xpose.msra.mxu0 0.0
    %1128 = vmatprep.subr.mxu0 0.0
    %1129 = vmatpush1.xpose.msra.mxu0 0.0
    %1130 = vmatprep.subr.mxu0 0.0
    %1131 = vmatpush1.xpose.msra.mxu0 0.0
    %1132 = vmatprep.subr.mxu0 0.0
    %1133 = vmatpush1.xpose.msra.mxu0 0.0
    %1134 = vmatprep.subr.mxu0 0.0
    %1135 = vmatpush1.xpose.msra.mxu0 0.0
    %1136 = vmatprep.subr.mxu0 0.0
    %1137 = vmatpush1.xpose.msra.mxu0 0.0
    %1138 = vmatprep.subr.mxu0 0.0
    %1139 = vmatpush1.xpose.msra.mxu0 0.0
    %1140 = vmatprep.subr.mxu0 0.0
    %1141 = vmatpush1.xpose.msra.mxu0 0.0
    %1142 = vmatprep.subr.mxu0 0.0
    %1143 = vmatpush1.xpose.msra.mxu0 0.0
    %1144 = vmatprep.subr.mxu0 0.0
    %1145 = vmatpush1.xpose.msra.mxu0 0.0
    %1146 = vmatprep.subr.mxu0 0.0
    %1147 = vmatpush1.xpose.msra.mxu0 0.0
    %1148 = vmatprep.subr.mxu0 0.0
    %1149 = vmatpush1.xpose.msra.mxu0 0.0
    %1150 = vmatprep.subr.mxu0 0.0
    %1151 = vmatpush1.xpose.msra.mxu0 0.0
    %1152 = vmatprep.subr.mxu0 0.0
    %1153 = vmatpush1.xpose.msra.mxu0 0.0
    %1154 = vmatprep.subr.mxu0 0.0
    %1155 = vmatpush1.xpose.msra.mxu0 0.0
    %1156 = vmatprep.subr.mxu0 0.0
    %1157 = vmatpush1.xpose.msra.mxu0 0.0
    %1158 = vmatprep.subr.mxu0 0.0
    %1159 = vmatpush1.xpose.msra.mxu0 0.0
    %1160 = vmatprep.subr.mxu0 0.0
    %1161 = vmatpush1.xpose.msra.mxu0 0.0
    %1162 = vmatprep.subr.mxu0 0.0
    %1163 = vmatpush1.xpose.msra.mxu0 0.0
    %1164 = vmatprep.subr.mxu0 0.0
    %1165 = vmatpush1.xpose.msra.mxu0 0.0
    %1166 = vmatprep.mubr.f32.mxu0 0.0
    %1167 = vmatmul.mubr.f32.gmra.mrb[0].mxu0 %v1098
    %v1168 = vpop.f32.mrb[0].mxu0
    %v1169 = vadd.f32 %v426, %v1168
    %v1170 = vpop.f32.mrb[0].mxu0
    %1171 = vdwg.mxu0
    %1172 = vrot.lane.b32.xlu0 %v421, 112
    %v1173 = vpop.permute.xlu0 %1172
    %1174 = vrot.lane.b32.xlu0 %v325, 112
    %v1175 = vpop.permute.xlu0 %1174
    %v1176 = vsel %vm428, %v1173, 0
    %v1178 = vsel %vm428, %v1175, 0
    %1180 = vmatprep.subr.mxu0 0.0
    %1181 = vmatpush1.xpose.msra.mxu0 %v1178
    %1182 = vmatprep.subr.mxu0 0.0
    %1183 = vmatpush1.xpose.msra.mxu0 0.0
    %1184 = vmatprep.subr.mxu0 0.0
    %1185 = vmatpush1.xpose.msra.mxu0 0.0
    %1186 = vmatprep.subr.mxu0 0.0
    %1187 = vmatpush1.xpose.msra.mxu0 0.0
    %1188 = vmatprep.subr.mxu0 0.0
    %1189 = vmatpush1.xpose.msra.mxu0 0.0
    %1190 = vmatprep.subr.mxu0 0.0
    %1191 = vmatpush1.xpose.msra.mxu0 0.0
    %1192 = vmatprep.subr.mxu0 0.0
    %1193 = vmatpush1.xpose.msra.mxu0 0.0
    %1194 = vmatprep.subr.mxu0 0.0
    %1195 = vmatpush1.xpose.msra.mxu0 0.0
    %1196 = vmatprep.subr.mxu0 0.0
    %1197 = vmatpush1.xpose.msra.mxu0 0.0
    %1198 = vmatprep.subr.mxu0 0.0
    %1199 = vmatpush1.xpose.msra.mxu0 0.0
    %1200 = vmatprep.subr.mxu0 0.0
    %1201 = vmatpush1.xpose.msra.mxu0 0.0
    %1202 = vmatprep.subr.mxu0 0.0
    %1203 = vmatpush1.xpose.msra.mxu0 0.0
    %1204 = vmatprep.subr.mxu0 0.0
    %1205 = vmatpush1.xpose.msra.mxu0 0.0
    %1206 = vmatprep.subr.mxu0 0.0
    %1207 = vmatpush1.xpose.msra.mxu0 0.0
    %1208 = vmatprep.subr.mxu0 0.0
    %1209 = vmatpush1.xpose.msra.mxu0 0.0
    %1210 = vmatprep.subr.mxu0 0.0
    %1211 = vmatpush1.xpose.msra.mxu0 0.0
    %1212 = vmatprep.subr.mxu0 0.0
    %1213 = vmatpush1.xpose.msra.mxu0 0.0
    %1214 = vmatprep.subr.mxu0 0.0
    %1215 = vmatpush1.xpose.msra.mxu0 0.0
    %1216 = vmatprep.subr.mxu0 0.0
    %1217 = vmatpush1.xpose.msra.mxu0 0.0
    %1218 = vmatprep.subr.mxu0 0.0
    %1219 = vmatpush1.xpose.msra.mxu0 0.0
    %1220 = vmatprep.subr.mxu0 0.0
    %1221 = vmatpush1.xpose.msra.mxu0 0.0
    %1222 = vmatprep.subr.mxu0 0.0
    %1223 = vmatpush1.xpose.msra.mxu0 0.0
    %1224 = vmatprep.subr.mxu0 0.0
    %1225 = vmatpush1.xpose.msra.mxu0 0.0
    %1226 = vmatprep.subr.mxu0 0.0
    %1227 = vmatpush1.xpose.msra.mxu0 0.0
    %1228 = vmatprep.subr.mxu0 0.0
    %1229 = vmatpush1.xpose.msra.mxu0 0.0
    %1230 = vmatprep.subr.mxu0 0.0
    %1231 = vmatpush1.xpose.msra.mxu0 0.0
    %1232 = vmatprep.subr.mxu0 0.0
    %1233 = vmatpush1.xpose.msra.mxu0 0.0
    %1234 = vmatprep.subr.mxu0 0.0
    %1235 = vmatpush1.xpose.msra.mxu0 0.0
    %1236 = vmatprep.subr.mxu0 0.0
    %1237 = vmatpush1.xpose.msra.mxu0 0.0
    %1238 = vmatprep.subr.mxu0 0.0
    %1239 = vmatpush1.xpose.msra.mxu0 0.0
    %1240 = vmatprep.subr.mxu0 0.0
    %1241 = vmatpush1.xpose.msra.mxu0 0.0
    %1242 = vmatprep.subr.mxu0 0.0
    %1243 = vmatpush1.xpose.msra.mxu0 0.0
    %1244 = vmatprep.mubr.f32.mxu0 0.0
    %1245 = vmatmul.mubr.f32.gmra.mrb[0].mxu0 %v1176
    %v1246 = vpop.f32.mrb[0].mxu0
    %v1247 = vadd.f32 %v427, %v1246
    %v1248 = vpop.f32.mrb[0].mxu0
    %1249 = vdwg.mxu0
    %v1250 = vsel %vm428, %v1169, -inf
    %1251 = vmax.xlane.f32.xlu0 %v1250
    %v1252 = vpop.xlane.xlu0 %1251
    %v1253 = vsel %vm428, %v1247, -inf
    %1254 = vmax.xlane.f32.xlu0 %v1253
    %v1255 = vpop.xlane.xlu0 %1254
    %v1256 = vsub.f32 %v1169, %v1252
    %v1257 = vsub.f32 %v1247, %v1255
    %v1258 = vmul.f32 %v1256, 1.442695
    %v1259 = vpow.pop %v1258
    %v1260 = vmul.f32 %v1257, 1.442695
    %v1261 = vpow.pop %v1260
    %v1262 = vsel %vm428, %v1259, 0.0
    %1263 = vadd.xlane.f32.xlu0 %v1262
    %v1264 = vpop.xlane.xlu0 %1263
    %v1265 = vsel %vm428, %v1261, 0.0
    %1266 = vadd.xlane.f32.xlu0 %v1265
    %v1267 = vpop.xlane.xlu0 %1266
    %v1268 = vrcp.pop %v1264
    %v1269 = vrcp.pop %v1267
    %v1270 = vmul.f32 %v1259, %v1268
    %v1271 = vmul.f32 %v1261, %v1269
    %1272 = vrot.lane.b32.xlu0 %v412, 112
    %v1273 = vpop.permute.xlu0 %1272
    %v1276 = vsel %vm428, %v1270, 0
    %1278 = vmatprep.subr.mxu0 0.0
    %1279 = vmatpush1.msra.mxu0 %v1273
    %1280 = vmatprep.subr.mxu0 0.0
    %1281 = vmatpush1.msra.mxu0 0.0
    %1282 = vmatprep.subr.mxu0 0.0
    %1283 = vmatpush1.msra.mxu0 0.0
    %1284 = vmatprep.subr.mxu0 0.0
    %1285 = vmatpush1.msra.mxu0 0.0
    %1286 = vmatprep.subr.mxu0 0.0
    %1287 = vmatpush1.msra.mxu0 0.0
    %1288 = vmatprep.subr.mxu0 0.0
    %1289 = vmatpush1.msra.mxu0 0.0
    %1290 = vmatprep.subr.mxu0 0.0
    %1291 = vmatpush1.msra.mxu0 0.0
    %1292 = vmatprep.subr.mxu0 0.0
    %1293 = vmatpush1.msra.mxu0 0.0
    %1294 = vmatprep.subr.mxu0 0.0
    %1295 = vmatpush1.msra.mxu0 0.0
    %1296 = vmatprep.subr.mxu0 0.0
    %1297 = vmatpush1.msra.mxu0 0.0
    %1298 = vmatprep.subr.mxu0 0.0
    %1299 = vmatpush1.msra.mxu0 0.0
    %1300 = vmatprep.subr.mxu0 0.0
    %1301 = vmatpush1.msra.mxu0 0.0
    %1302 = vmatprep.subr.mxu0 0.0
    %1303 = vmatpush1.msra.mxu0 0.0
    %1304 = vmatprep.subr.mxu0 0.0
    %1305 = vmatpush1.msra.mxu0 0.0
    %1306 = vmatprep.subr.mxu0 0.0
    %1307 = vmatpush1.msra.mxu0 0.0
    %1308 = vmatprep.subr.mxu0 0.0
    %1309 = vmatpush1.msra.mxu0 0.0
    %1310 = vmatprep.subr.mxu0 0.0
    %1311 = vmatpush1.msra.mxu0 0.0
    %1312 = vmatprep.subr.mxu0 0.0
    %1313 = vmatpush1.msra.mxu0 0.0
    %1314 = vmatprep.subr.mxu0 0.0
    %1315 = vmatpush1.msra.mxu0 0.0
    %1316 = vmatprep.subr.mxu0 0.0
    %1317 = vmatpush1.msra.mxu0 0.0
    %1318 = vmatprep.subr.mxu0 0.0
    %1319 = vmatpush1.msra.mxu0 0.0
    %1320 = vmatprep.subr.mxu0 0.0
    %1321 = vmatpush1.msra.mxu0 0.0
    %1322 = vmatprep.subr.mxu0 0.0
    %1323 = vmatpush1.msra.mxu0 0.0
    %1324 = vmatprep.subr.mxu0 0.0
    %1325 = vmatpush1.msra.mxu0 0.0
    %1326 = vmatprep.subr.mxu0 0.0
    %1327 = vmatpush1.msra.mxu0 0.0
    %1328 = vmatprep.subr.mxu0 0.0
    %1329 = vmatpush1.msra.mxu0 0.0
    %1330 = vmatprep.subr.mxu0 0.0
    %1331 = vmatpush1.msra.mxu0 0.0
    %1332 = vmatprep.subr.mxu0 0.0
    %1333 = vmatpush1.msra.mxu0 0.0
    %1334 = vmatprep.subr.mxu0 0.0
    %1335 = vmatpush1.msra.mxu0 0.0
    %1336 = vmatprep.subr.mxu0 0.0
    %1337 = vmatpush1.msra.mxu0 0.0
    %1338 = vmatprep.subr.mxu0 0.0
    %1339 = vmatpush1.msra.mxu0 0.0
    %1340 = vmatprep.subr.mxu0 0.0
    %1341 = vmatpush1.msra.mxu0 0.0
    %1342 = vmatprep.mubr.f32.mxu0 0.0
    %1343 = vmatmul.mubr.f32.gmra.mrb[0].mxu0 %v1276
    %v1344 = vpop.f32.mrb[0].mxu0
    %v1345 = vadd.f32 0.0, %v1344
    %v1346 = vpop.f32.mrb[0].mxu0
    %1347 = vdwg.mxu0
    %1348 = vrot.lane.b32.xlu0 %v417, 112
    %v1349 = vpop.permute.xlu0 %1348
    %v1352 = vsel %vm428, %v1271, 0
    %1354 = vmatprep.subr.mxu0 0.0
    %1355 = vmatpush1.msra.mxu0 %v1349
    %1356 = vmatprep.subr.mxu0 0.0
    %1357 = vmatpush1.msra.mxu0 0.0
    %1358 = vmatprep.subr.mxu0 0.0
    %1359 = vmatpush1.msra.mxu0 0.0
    %1360 = vmatprep.subr.mxu0 0.0
    %1361 = vmatpush1.msra.mxu0 0.0
    %1362 = vmatprep.subr.mxu0 0.0
    %1363 = vmatpush1.msra.mxu0 0.0
    %1364 = vmatprep.subr.mxu0 0.0
    %1365 = vmatpush1.msra.mxu0 0.0
    %1366 = vmatprep.subr.mxu0 0.0
    %1367 = vmatpush1.msra.mxu0 0.0
    %1368 = vmatprep.subr.mxu0 0.0
    %1369 = vmatpush1.msra.mxu0 0.0
    %1370 = vmatprep.subr.mxu0 0.0
    %1371 = vmatpush1.msra.mxu0 0.0
    %1372 = vmatprep.subr.mxu0 0.0
    %1373 = vmatpush1.msra.mxu0 0.0
    %1374 = vmatprep.subr.mxu0 0.0
    %1375 = vmatpush1.msra.mxu0 0.0
    %1376 = vmatprep.subr.mxu0 0.0
    %1377 = vmatpush1.msra.mxu0 0.0
    %1378 = vmatprep.subr.mxu0 0.0
    %1379 = vmatpush1.msra.mxu0 0.0
    %1380 = vmatprep.subr.mxu0 0.0
    %1381 = vmatpush1.msra.mxu0 0.0
    %1382 = vmatprep.subr.mxu0 0.0
    %1383 = vmatpush1.msra.mxu0 0.0
    %1384 = vmatprep.subr.mxu0 0.0
    %1385 = vmatpush1.msra.mxu0 0.0
    %1386 = vmatprep.subr.mxu0 0.0
    %1387 = vmatpush1.msra.mxu0 0.0
    %1388 = vmatprep.subr.mxu0 0.0
    %1389 = vmatpush1.msra.mxu0 0.0
    %1390 = vmatprep.subr.mxu0 0.0
    %1391 = vmatpush1.msra.mxu0 0.0
    %1392 = vmatprep.subr.mxu0 0.0
    %1393 = vmatpush1.msra.mxu0 0.0
    %1394 = vmatprep.subr.mxu0 0.0
    %1395 = vmatpush1.msra.mxu0 0.0
    %1396 = vmatprep.subr.mxu0 0.0
    %1397 = vmatpush1.msra.mxu0 0.0
    %1398 = vmatprep.subr.mxu0 0.0
    %1399 = vmatpush1.msra.mxu0 0.0
    %1400 = vmatprep.subr.mxu0 0.0
    %1401 = vmatpush1.msra.mxu0 0.0
    %1402 = vmatprep.subr.mxu0 0.0
    %1403 = vmatpush1.msra.mxu0 0.0
    %1404 = vmatprep.subr.mxu0 0.0
    %1405 = vmatpush1.msra.mxu0 0.0
    %1406 = vmatprep.subr.mxu0 0.0
    %1407 = vmatpush1.msra.mxu0 0.0
    %1408 = vmatprep.subr.mxu0 0.0
    %1409 = vmatpush1.msra.mxu0 0.0
    %1410 = vmatprep.subr.mxu0 0.0
    %1411 = vmatpush1.msra.mxu0 0.0
    %1412 = vmatprep.subr.mxu0 0.0
    %1413 = vmatpush1.msra.mxu0 0.0
    %1414 = vmatprep.subr.mxu0 0.0
    %1415 = vmatpush1.msra.mxu0 0.0
    %1416 = vmatprep.subr.mxu0 0.0
    %1417 = vmatpush1.msra.mxu0 0.0
    %1418 = vmatprep.mubr.f32.mxu0 0.0
    %1419 = vmatmul.mubr.f32.gmra.mrb[0].mxu0 %v1352
    %v1420 = vpop.f32.mrb[0].mxu0
    %v1421 = vadd.f32 0.0, %v1420
    %v1422 = vpop.f32.mrb[0].mxu0
    %1423 = vdwg.mxu0
    %1426 = vrot.lane.b32.xlu0 %v1345, 16
    %v1427 = vpop.permute.xlu0 %1426
    %1428 = vrot.lane.b32.xlu0 %v1421, 16
    %v1429 = vpop.permute.xlu0 %1428
    %vm1432 = vcmask 195712
    %1433 = vst.msk [vmem:[#allocation2] sm:$0xff] %vm1432, %v1427
    %1434 = vst.msk [vmem:[#allocation2 + $0x8] sm:$0xff] %vm1432, %v1429
    %1435 = vrot.lane.b32.xlu0 %v420, 104
    %v1436 = vpop.permute.xlu0 %1435
    %1437 = vrot.lane.b32.xlu0 %v320, 104
    %v1438 = vpop.permute.xlu0 %1437
    %v1439 = vsel %vm428, %v1436, 0
    %v1441 = vsel %vm428, %v1438, 0
    %1443 = vmatprep.subr.mxu0 0.0
    %1444 = vmatpush1.xpose.msra.mxu0 %v1441
    %1445 = vmatprep.subr.mxu0 0.0
    %1446 = vmatpush1.xpose.msra.mxu0 0.0
    %1447 = vmatprep.subr.mxu0 0.0
    %1448 = vmatpush1.xpose.msra.mxu0 0.0
    %1449 = vmatprep.subr.mxu0 0.0
    %1450 = vmatpush1.xpose.msra.mxu0 0.0
    %1451 = vmatprep.subr.mxu0 0.0
    %1452 = vmatpush1.xpose.msra.mxu0 0.0
    %1453 = vmatprep.subr.mxu0 0.0
    %1454 = vmatpush1.xpose.msra.mxu0 0.0
    %1455 = vmatprep.subr.mxu0 0.0
    %1456 = vmatpush1.xpose.msra.mxu0 0.0
    %1457 = vmatprep.subr.mxu0 0.0
    %1458 = vmatpush1.xpose.msra.mxu0 0.0
    %1459 = vmatprep.subr.mxu0 0.0
    %1460 = vmatpush1.xpose.msra.mxu0 0.0
    %1461 = vmatprep.subr.mxu0 0.0
    %1462 = vmatpush1.xpose.msra.mxu0 0.0
    %1463 = vmatprep.subr.mxu0 0.0
    %1464 = vmatpush1.xpose.msra.mxu0 0.0
    %1465 = vmatprep.subr.mxu0 0.0
    %1466 = vmatpush1.xpose.msra.mxu0 0.0
    %1467 = vmatprep.subr.mxu0 0.0
    %1468 = vmatpush1.xpose.msra.mxu0 0.0
    %1469 = vmatprep.subr.mxu0 0.0
    %1470 = vmatpush1.xpose.msra.mxu0 0.0
    %1471 = vmatprep.subr.mxu0 0.0
    %1472 = vmatpush1.xpose.msra.mxu0 0.0
    %1473 = vmatprep.subr.mxu0 0.0
    %1474 = vmatpush1.xpose.msra.mxu0 0.0
    %1475 = vmatprep.subr.mxu0 0.0
    %1476 = vmatpush1.xpose.msra.mxu0 0.0
    %1477 = vmatprep.subr.mxu0 0.0
    %1478 = vmatpush1.xpose.msra.mxu0 0.0
    %1479 = vmatprep.subr.mxu0 0.0
    %1480 = vmatpush1.xpose.msra.mxu0 0.0
    %1481 = vmatprep.subr.mxu0 0.0
    %1482 = vmatpush1.xpose.msra.mxu0 0.0
    %1483 = vmatprep.subr.mxu0 0.0
    %1484 = vmatpush1.xpose.msra.mxu0 0.0
    %1485 = vmatprep.subr.mxu0 0.0
    %1486 = vmatpush1.xpose.msra.mxu0 0.0
    %1487 = vmatprep.subr.mxu0 0.0
    %1488 = vmatpush1.xpose.msra.mxu0 0.0
    %1489 = vmatprep.subr.mxu0 0.0
    %1490 = vmatpush1.xpose.msra.mxu0 0.0
    %1491 = vmatprep.subr.mxu0 0.0
    %1492 = vmatpush1.xpose.msra.mxu0 0.0
    %1493 = vmatprep.subr.mxu0 0.0
    %1494 = vmatpush1.xpose.msra.mxu0 0.0
    %1495 = vmatprep.subr.mxu0 0.0
    %1496 = vmatpush1.xpose.msra.mxu0 0.0
    %1497 = vmatprep.subr.mxu0 0.0
    %1498 = vmatpush1.xpose.msra.mxu0 0.0
    %1499 = vmatprep.subr.mxu0 0.0
    %1500 = vmatpush1.xpose.msra.mxu0 0.0
    %1501 = vmatprep.subr.mxu0 0.0
    %1502 = vmatpush1.xpose.msra.mxu0 0.0
    %1503 = vmatprep.subr.mxu0 0.0
    %1504 = vmatpush1.xpose.msra.mxu0 0.0
    %1505 = vmatprep.subr.mxu0 0.0
    %1506 = vmatpush1.xpose.msra.mxu0 0.0
    %1507 = vmatprep.mubr.f32.mxu0 0.0
    %1508 = vmatmul.mubr.f32.gmra.mrb[0].mxu0 %v1439
    %v1509 = vpop.f32.mrb[0].mxu0
    %v1510 = vadd.f32 %v426, %v1509
    %v1511 = vpop.f32.mrb[0].mxu0
    %1512 = vdwg.mxu0
    %1513 = vrot.lane.b32.xlu0 %v421, 104
    %v1514 = vpop.permute.xlu0 %1513
    %1515 = vrot.lane.b32.xlu0 %v325, 104
    %v1516 = vpop.permute.xlu0 %1515
    %v1517 = vsel %vm428, %v1514, 0
    %v1519 = vsel %vm428, %v1516, 0
    %1521 = vmatprep.subr.mxu0 0.0
    %1522 = vmatpush1.xpose.msra.mxu0 %v1519
    %1523 = vmatprep.subr.mxu0 0.0
    %1524 = vmatpush1.xpose.msra.mxu0 0.0
    %1525 = vmatprep.subr.mxu0 0.0
    %1526 = vmatpush1.xpose.msra.mxu0 0.0
    %1527 = vmatprep.subr.mxu0 0.0
    %1528 = vmatpush1.xpose.msra.mxu0 0.0
    %1529 = vmatprep.subr.mxu0 0.0
    %1530 = vmatpush1.xpose.msra.mxu0 0.0
    %1531 = vmatprep.subr.mxu0 0.0
    %1532 = vmatpush1.xpose.msra.mxu0 0.0
    %1533 = vmatprep.subr.mxu0 0.0
    %1534 = vmatpush1.xpose.msra.mxu0 0.0
    %1535 = vmatprep.subr.mxu0 0.0
    %1536 = vmatpush1.xpose.msra.mxu0 0.0
    %1537 = vmatprep.subr.mxu0 0.0
    %1538 = vmatpush1.xpose.msra.mxu0 0.0
    %1539 = vmatprep.subr.mxu0 0.0
    %1540 = vmatpush1.xpose.msra.mxu0 0.0
    %1541 = vmatprep.subr.mxu0 0.0
    %1542 = vmatpush1.xpose.msra.mxu0 0.0
    %1543 = vmatprep.subr.mxu0 0.0
    %1544 = vmatpush1.xpose.msra.mxu0 0.0
    %1545 = vmatprep.subr.mxu0 0.0
    %1546 = vmatpush1.xpose.msra.mxu0 0.0
    %1547 = vmatprep.subr.mxu0 0.0
    %1548 = vmatpush1.xpose.msra.mxu0 0.0
    %1549 = vmatprep.subr.mxu0 0.0
    %1550 = vmatpush1.xpose.msra.mxu0 0.0
    %1551 = vmatprep.subr.mxu0 0.0
    %1552 = vmatpush1.xpose.msra.mxu0 0.0
    %1553 = vmatprep.subr.mxu0 0.0
    %1554 = vmatpush1.xpose.msra.mxu0 0.0
    %1555 = vmatprep.subr.mxu0 0.0
    %1556 = vmatpush1.xpose.msra.mxu0 0.0
    %1557 = vmatprep.subr.mxu0 0.0
    %1558 = vmatpush1.xpose.msra.mxu0 0.0
    %1559 = vmatprep.subr.mxu0 0.0
    %1560 = vmatpush1.xpose.msra.mxu0 0.0
    %1561 = vmatprep.subr.mxu0 0.0
    %1562 = vmatpush1.xpose.msra.mxu0 0.0
    %1563 = vmatprep.subr.mxu0 0.0
    %1564 = vmatpush1.xpose.msra.mxu0 0.0
    %1565 = vmatprep.subr.mxu0 0.0
    %1566 = vmatpush1.xpose.msra.mxu0 0.0
    %1567 = vmatprep.subr.mxu0 0.0
    %1568 = vmatpush1.xpose.msra.mxu0 0.0
    %1569 = vmatprep.subr.mxu0 0.0
    %1570 = vmatpush1.xpose.msra.mxu0 0.0
    %1571 = vmatprep.subr.mxu0 0.0
    %1572 = vmatpush1.xpose.msra.mxu0 0.0
    %1573 = vmatprep.subr.mxu0 0.0
    %1574 = vmatpush1.xpose.msra.mxu0 0.0
    %1575 = vmatprep.subr.mxu0 0.0
    %1576 = vmatpush1.xpose.msra.mxu0 0.0
    %1577 = vmatprep.subr.mxu0 0.0
    %1578 = vmatpush1.xpose.msra.mxu0 0.0
    %1579 = vmatprep.subr.mxu0 0.0
    %1580 = vmatpush1.xpose.msra.mxu0 0.0
    %1581 = vmatprep.subr.mxu0 0.0
    %1582 = vmatpush1.xpose.msra.mxu0 0.0
    %1583 = vmatprep.subr.mxu0 0.0
    %1584 = vmatpush1.xpose.msra.mxu0 0.0
    %1585 = vmatprep.mubr.f32.mxu0 0.0
    %1586 = vmatmul.mubr.f32.gmra.mrb[0].mxu0 %v1517
    %v1587 = vpop.f32.mrb[0].mxu0
    %v1588 = vadd.f32 %v427, %v1587
    %v1589 = vpop.f32.mrb[0].mxu0
    %1590 = vdwg.mxu0
    %v1591 = vsel %vm428, %v1510, -inf
    %1592 = vmax.xlane.f32.xlu0 %v1591
    %v1593 = vpop.xlane.xlu0 %1592
    %v1594 = vsel %vm428, %v1588, -inf
    %1595 = vmax.xlane.f32.xlu0 %v1594
    %v1596 = vpop.xlane.xlu0 %1595
    %v1597 = vsub.f32 %v1510, %v1593
    %v1598 = vsub.f32 %v1588, %v1596
    %v1599 = vmul.f32 %v1597, 1.442695
    %v1600 = vpow.pop %v1599
    %v1601 = vmul.f32 %v1598, 1.442695
    %v1602 = vpow.pop %v1601
    %v1603 = vsel %vm428, %v1600, 0.0
    %1604 = vadd.xlane.f32.xlu0 %v1603
    %v1605 = vpop.xlane.xlu0 %1604
    %v1606 = vsel %vm428, %v1602, 0.0
    %1607 = vadd.xlane.f32.xlu0 %v1606
    %v1608 = vpop.xlane.xlu0 %1607
    %v1609 = vrcp.pop %v1605
    %v1610 = vrcp.pop %v1608
    %v1611 = vmul.f32 %v1600, %v1609
    %v1612 = vmul.f32 %v1602, %v1610
    %1613 = vrot.lane.b32.xlu0 %v412, 104
    %v1614 = vpop.permute.xlu0 %1613
    %v1617 = vsel %vm428, %v1611, 0
    %1619 = vmatprep.subr.mxu0 0.0
    %1620 = vmatpush1.msra.mxu0 %v1614
    %1621 = vmatprep.subr.mxu0 0.0
    %1622 = vmatpush1.msra.mxu0 0.0
    %1623 = vmatprep.subr.mxu0 0.0
    %1624 = vmatpush1.msra.mxu0 0.0
    %1625 = vmatprep.subr.mxu0 0.0
    %1626 = vmatpush1.msra.mxu0 0.0
    %1627 = vmatprep.subr.mxu0 0.0
    %1628 = vmatpush1.msra.mxu0 0.0
    %1629 = vmatprep.subr.mxu0 0.0
    %1630 = vmatpush1.msra.mxu0 0.0
    %1631 = vmatprep.subr.mxu0 0.0
    %1632 = vmatpush1.msra.mxu0 0.0
    %1633 = vmatprep.subr.mxu0 0.0
    %1634 = vmatpush1.msra.mxu0 0.0
    %1635 = vmatprep.subr.mxu0 0.0
    %1636 = vmatpush1.msra.mxu0 0.0
    %1637 = vmatprep.subr.mxu0 0.0
    %1638 = vmatpush1.msra.mxu0 0.0
    %1639 = vmatprep.subr.mxu0 0.0
    %1640 = vmatpush1.msra.mxu0 0.0
    %1641 = vmatprep.subr.mxu0 0.0
    %1642 = vmatpush1.msra.mxu0 0.0
    %1643 = vmatprep.subr.mxu0 0.0
    %1644 = vmatpush1.msra.mxu0 0.0
    %1645 = vmatprep.subr.mxu0 0.0
    %1646 = vmatpush1.msra.mxu0 0.0
    %1647 = vmatprep.subr.mxu0 0.0
    %1648 = vmatpush1.msra.mxu0 0.0
    %1649 = vmatprep.subr.mxu0 0.0
    %1650 = vmatpush1.msra.mxu0 0.0
    %1651 = vmatprep.subr.mxu0 0.0
    %1652 = vmatpush1.msra.mxu0 0.0
    %1653 = vmatprep.subr.mxu0 0.0
    %1654 = vmatpush1.msra.mxu0 0.0
    %1655 = vmatprep.subr.mxu0 0.0
    %1656 = vmatpush1.msra.mxu0 0.0
    %1657 = vmatprep.subr.mxu0 0.0
    %1658 = vmatpush1.msra.mxu0 0.0
    %1659 = vmatprep.subr.mxu0 0.0
    %1660 = vmatpush1.msra.mxu0 0.0
    %1661 = vmatprep.subr.mxu0 0.0
    %1662 = vmatpush1.msra.mxu0 0.0
    %1663 = vmatprep.subr.mxu0 0.0
    %1664 = vmatpush1.msra.mxu0 0.0
    %1665 = vmatprep.subr.mxu0 0.0
    %1666 = vmatpush1.msra.mxu0 0.0
    %1667 = vmatprep.subr.mxu0 0.0
    %1668 = vmatpush1.msra.mxu0 0.0
    %1669 = vmatprep.subr.mxu0 0.0
    %1670 = vmatpush1.msra.mxu0 0.0
    %1671 = vmatprep.subr.mxu0 0.0
    %1672 = vmatpush1.msra.mxu0 0.0
    %1673 = vmatprep.subr.mxu0 0.0
    %1674 = vmatpush1.msra.mxu0 0.0
    %1675 = vmatprep.subr.mxu0 0.0
    %1676 = vmatpush1.msra.mxu0 0.0
    %1677 = vmatprep.subr.mxu0 0.0
    %1678 = vmatpush1.msra.mxu0 0.0
    %1679 = vmatprep.subr.mxu0 0.0
    %1680 = vmatpush1.msra.mxu0 0.0
    %1681 = vmatprep.subr.mxu0 0.0
    %1682 = vmatpush1.msra.mxu0 0.0
    %1683 = vmatprep.mubr.f32.mxu0 0.0
    %1684 = vmatmul.mubr.f32.gmra.mrb[0].mxu0 %v1617
    %v1685 = vpop.f32.mrb[0].mxu0
    %v1686 = vadd.f32 0.0, %v1685
    %v1687 = vpop.f32.mrb[0].mxu0
    %1688 = vdwg.mxu0
    %1689 = vrot.lane.b32.xlu0 %v417, 104
    %v1690 = vpop.permute.xlu0 %1689
    %v1693 = vsel %vm428, %v1612, 0
    %1695 = vmatprep.subr.mxu0 0.0
    %1696 = vmatpush1.msra.mxu0 %v1690
    %1697 = vmatprep.subr.mxu0 0.0
    %1698 = vmatpush1.msra.mxu0 0.0
    %1699 = vmatprep.subr.mxu0 0.0
    %1700 = vmatpush1.msra.mxu0 0.0
    %1701 = vmatprep.subr.mxu0 0.0
    %1702 = vmatpush1.msra.mxu0 0.0
    %1703 = vmatprep.subr.mxu0 0.0
    %1704 = vmatpush1.msra.mxu0 0.0
    %1705 = vmatprep.subr.mxu0 0.0
    %1706 = vmatpush1.msra.mxu0 0.0
    %1707 = vmatprep.subr.mxu0 0.0
    %1708 = vmatpush1.msra.mxu0 0.0
    %1709 = vmatprep.subr.mxu0 0.0
    %1710 = vmatpush1.msra.mxu0 0.0
    %1711 = vmatprep.subr.mxu0 0.0
    %1712 = vmatpush1.msra.mxu0 0.0
    %1713 = vmatprep.subr.mxu0 0.0
    %1714 = vmatpush1.msra.mxu0 0.0
    %1715 = vmatprep.subr.mxu0 0.0
    %1716 = vmatpush1.msra.mxu0 0.0
    %1717 = vmatprep.subr.mxu0 0.0
    %1718 = vmatpush1.msra.mxu0 0.0
    %1719 = vmatprep.subr.mxu0 0.0
    %1720 = vmatpush1.msra.mxu0 0.0
    %1721 = vmatprep.subr.mxu0 0.0
    %1722 = vmatpush1.msra.mxu0 0.0
    %1723 = vmatprep.subr.mxu0 0.0
    %1724 = vmatpush1.msra.mxu0 0.0
    %1725 = vmatprep.subr.mxu0 0.0
    %1726 = vmatpush1.msra.mxu0 0.0
    %1727 = vmatprep.subr.mxu0 0.0
    %1728 = vmatpush1.msra.mxu0 0.0
    %1729 = vmatprep.subr.mxu0 0.0
    %1730 = vmatpush1.msra.mxu0 0.0
    %1731 = vmatprep.subr.mxu0 0.0
    %1732 = vmatpush1.msra.mxu0 0.0
    %1733 = vmatprep.subr.mxu0 0.0
    %1734 = vmatpush1.msra.mxu0 0.0
    %1735 = vmatprep.subr.mxu0 0.0
    %1736 = vmatpush1.msra.mxu0 0.0
    %1737 = vmatprep.subr.mxu0 0.0
    %1738 = vmatpush1.msra.mxu0 0.0
    %1739 = vmatprep.subr.mxu0 0.0
    %1740 = vmatpush1.msra.mxu0 0.0
    %1741 = vmatprep.subr.mxu0 0.0
    %1742 = vmatpush1.msra.mxu0 0.0
    %1743 = vmatprep.subr.mxu0 0.0
    %1744 = vmatpush1.msra.mxu0 0.0
    %1745 = vmatprep.subr.mxu0 0.0
    %1746 = vmatpush1.msra.mxu0 0.0
    %1747 = vmatprep.subr.mxu0 0.0
    %1748 = vmatpush1.msra.mxu0 0.0
    %1749 = vmatprep.subr.mxu0 0.0
    %1750 = vmatpush1.msra.mxu0 0.0
    %1751 = vmatprep.subr.mxu0 0.0
    %1752 = vmatpush1.msra.mxu0 0.0
    %1753 = vmatprep.subr.mxu0 0.0
    %1754 = vmatpush1.msra.mxu0 0.0
    %1755 = vmatprep.subr.mxu0 0.0
    %1756 = vmatpush1.msra.mxu0 0.0
    %1757 = vmatprep.subr.mxu0 0.0
    %1758 = vmatpush1.msra.mxu0 0.0
    %1759 = vmatprep.mubr.f32.mxu0 0.0
    %1760 = vmatmul.mubr.f32.gmra.mrb[0].mxu0 %v1693
    %v1761 = vpop.f32.mrb[0].mxu0
    %v1762 = vadd.f32 0.0, %v1761
    %v1763 = vpop.f32.mrb[0].mxu0
    %1764 = vdwg.mxu0
    %1767 = vrot.lane.b32.xlu0 %v1686, 24
    %v1768 = vpop.permute.xlu0 %1767
    %1769 = vrot.lane.b32.xlu0 %v1762, 24
    %v1770 = vpop.permute.xlu0 %1769
    %vm1773 = vcmask 261312
    %1774 = vst.msk [vmem:[#allocation2] sm:$0xff] %vm1773, %v1768
    %1775 = vst.msk [vmem:[#allocation2 + $0x8] sm:$0xff] %vm1773, %v1770
    %v1776 = vld [vmem:[#allocation2] sm:$0xff]
    %v1777 = vld [vmem:[#allocation2 + $0x8] sm:$0xff]
    %v1778 = vld [vmem:[%s10] sm:$0xff]
    %v1779 = vld [vmem:[%s10 + $0x8] sm:$0xff]
    %v1780 = vld [vmem:[%s10 + $0x10] sm:$0xff]
    %v1781 = vld [vmem:[%s10 + $0x18] sm:$0xff]
    %v1782 = vld [vmem:[%s11] sm:$0x1]
    %v1784 = vlaneseq
    %v1785 = vshrl.u32 %v1784, 7
    %v1786 = vsub.s32 0, %v1785
    %v1787 = vrot.slane %v1782, %v1786
    %v1790 = vsel %vm154, %v1776, 0
    %v1793 = vsel %vm154, %v1777, 0
    %1795 = vmatprep.subr.mxu0 0.0
    %1796 = vmatpush1.msra.mxu0 %v1778
    %1797 = vmatprep.subr.mxu0 0.0
    %1798 = vmatpush1.msra.mxu0 %v1779
    %1799 = vmatprep.subr.mxu0 0.0
    %1800 = vmatpush1.msra.mxu0 %v1780
    %1801 = vmatprep.subr.mxu0 0.0
    %1802 = vmatpush1.msra.mxu0 %v1781
    %1803 = vmatprep.subr.mxu0 0.0
    %1804 = vmatpush1.msra.mxu0 0.0
    %1805 = vmatprep.subr.mxu0 0.0
    %1806 = vmatpush1.msra.mxu0 0.0
    %1807 = vmatprep.subr.mxu0 0.0
    %1808 = vmatpush1.msra.mxu0 0.0
    %1809 = vmatprep.subr.mxu0 0.0
    %1810 = vmatpush1.msra.mxu0 0.0
    %1811 = vmatprep.subr.mxu0 0.0
    %1812 = vmatpush1.msra.mxu0 0.0
    %1813 = vmatprep.subr.mxu0 0.0
    %1814 = vmatpush1.msra.mxu0 0.0
    %1815 = vmatprep.subr.mxu0 0.0
    %1816 = vmatpush1.msra.mxu0 0.0
    %1817 = vmatprep.subr.mxu0 0.0
    %1818 = vmatpush1.msra.mxu0 0.0
    %1819 = vmatprep.subr.mxu0 0.0
    %1820 = vmatpush1.msra.mxu0 0.0
    %1821 = vmatprep.subr.mxu0 0.0
    %1822 = vmatpush1.msra.mxu0 0.0
    %1823 = vmatprep.subr.mxu0 0.0
    %1824 = vmatpush1.msra.mxu0 0.0
    %1825 = vmatprep.subr.mxu0 0.0
    %1826 = vmatpush1.msra.mxu0 0.0
    %1827 = vmatprep.subr.mxu0 0.0
    %1828 = vmatpush1.msra.mxu0 0.0
    %1829 = vmatprep.subr.mxu0 0.0
    %1830 = vmatpush1.msra.mxu0 0.0
    %1831 = vmatprep.subr.mxu0 0.0
    %1832 = vmatpush1.msra.mxu0 0.0
    %1833 = vmatprep.subr.mxu0 0.0
    %1834 = vmatpush1.msra.mxu0 0.0
    %1835 = vmatprep.subr.mxu0 0.0
    %1836 = vmatpush1.msra.mxu0 0.0
    %1837 = vmatprep.subr.mxu0 0.0
    %1838 = vmatpush1.msra.mxu0 0.0
    %1839 = vmatprep.subr.mxu0 0.0
    %1840 = vmatpush1.msra.mxu0 0.0
    %1841 = vmatprep.subr.mxu0 0.0
    %1842 = vmatpush1.msra.mxu0 0.0
    %1843 = vmatprep.subr.mxu0 0.0
    %1844 = vmatpush1.msra.mxu0 0.0
    %1845 = vmatprep.subr.mxu0 0.0
    %1846 = vmatpush1.msra.mxu0 0.0
    %1847 = vmatprep.subr.mxu0 0.0
    %1848 = vmatpush1.msra.mxu0 0.0
    %1849 = vmatprep.subr.mxu0 0.0
    %1850 = vmatpush1.msra.mxu0 0.0
    %1851 = vmatprep.subr.mxu0 0.0
    %1852 = vmatpush1.msra.mxu0 0.0
    %1853 = vmatprep.subr.mxu0 0.0
    %1854 = vmatpush1.msra.mxu0 0.0
    %1855 = vmatprep.subr.mxu0 0.0
    %1856 = vmatpush1.msra.mxu0 0.0
    %1857 = vmatprep.subr.mxu0 0.0
    %1858 = vmatpush1.msra.mxu0 0.0
    %1859 = vmatprep.mubr.f32.mxu0 0.0
    %1860 = vmatmul.mubr.f32.gmra.mrb[0].mxu0 %v1790
    %v1861 = vpop.f32.mrb[0].mxu0
    %v1862 = vadd.f32 %v1787, %v1861
    %v1863 = vpop.f32.mrb[0].mxu0
    %1864 = vmatprep.mubr.f32.mxu0 0.0
    %1865 = vmatmul.mubr.f32.gmra.mrb[0].mxu0 %v1793
    %v1866 = vpop.f32.mrb[0].mxu0
    %v1867 = vadd.f32 %v1787, %v1866
    %v1868 = vpop.f32.mrb[0].mxu0
    %1869 = vdwg.mxu0
    %1870 = vst.msk [vmem:[#allocation15] sm:$0xff] %vm154, %v1862
    %1871 = vst.msk [vmem:[#allocation15 + $0x8] sm:$0xff] %vm154, %v1867
    // Predicated region
    $region78: #{tpu_custom_call.1} parent=1 // pred_check
      _
    $region79: #{tpu_custom_call.1} parent=1 // pred_check_branch
      %1873 = sbr.rel (0) target = $region81
    $region80: #{tpu_custom_call.1} parent=1 // pred_region
      %s1875 = ssub.s32 256, 256
      %1876 = vsyncadd [#allocation5], %s1875
      %s1877 = sshll.u32 [#allocation15], 4
      %s1878 = int_to_ptr.vmem [resolvable:$true] %s1877
      %1883 = dma.vmem_to_hbm [thread:$0]  %s1878, 256, %s12, [#allocation5], 128, 128, 8
    $region81: #{tpu_custom_call.1} parent=1 // pred_fallthru
      _
    // Predicated region
    $region82: #{tpu_custom_call.1} parent=1 // pred_check
      _
    $region83: #{tpu_custom_call.1} parent=1 // pred_check_branch
      %1885 = sbr.rel (0) target = $region85
    $region84: #{tpu_custom_call.1} parent=1 // pred_region
      %1886 = dma.done [#allocation5], 256
    $region85: #{tpu_custom_call.1} parent=1 // pred_fallthru
      _
    %1887 = vsyncpa [#allocation4], 1
    %1888 = vsyncpa [#allocation7], 1
    %1889 = vsyncpa [#allocation10], 1
    %1890 = vsyncpa [#allocation13], 1
    %1891 = vsyncpa [#allocation5], 1

</llo_original>
